<compile_context>
chip_gen: v6e
topology: v6e:2x2x1
jax: 0.10.0
libtpu: 0.0.40
codegen_flags: <defaults>
</compile_context>

<pallas_src>
import jax
import jax.numpy as jnp
from jax.experimental import pallas as pl
from jax.experimental.pallas import tpu as pltpu

NEG_SLOPE = 0.01
LANE = 128          # lane width / padded channel width
HALO = 8            # zero-halo rows per batch element (>= max conv pad, multiple of 8)

# Set to jnp.bfloat16 on v6e / v7x (see header note).
MATMUL_DTYPE = jnp.float32


def _leaky(x):
    return jnp.where(x > 0, x, NEG_SLOPE * x)


# ---------------------------------------------------------------------------
# Fused kernel
# ---------------------------------------------------------------------------
def fused_cnn_kernel(x_ref, w1_ref, b1_ref, w2_ref, b2_ref, w3_ref, b3_ref,
                     f1_ref, bf1_ref, f2_ref, bf2_ref, o_ref, pbuf):
    """conv1 -> conv2 -> conv3 -> fc1 -> fc2 for a block of BB batch elements.

    x_ref  : (BB, T, Cin)            channels-last input block
    wN_ref : (K, CinN, 128)          per-tap conv weights, channels zero-padded
    bN_ref : (1, 128)                conv biases (zero padded)
    f1_ref : (128, 32)  f2_ref: (32, 128)   fc weights (zero padded)
    o_ref  : (BB, T, O)              O-wide output block (no HBM lane padding)
    pbuf   : (BB, T + 2*HALO, 128)   scratch: per-batch zero-halo activations
    """
    BB, T, Cin = x_ref.shape
    S = pbuf.shape[1]
    CW = pbuf.shape[2]
    H = (S - T) // 2
    O = o_ref.shape[-1]
    R = BB * T

    # Re-zero only the halo rows, every step (cheap).  Required for megacore /
    # dual-TC "parallel" splits where each core owns its own scratch.
    pbuf[:, :H, :] = jnp.zeros((BB, H, CW), jnp.float32)
    pbuf[:, H + T:, :] = jnp.zeros((BB, H, CW), jnp.float32)

    # Layer-1 input into the valid rows; halo rows provide the 'same' padding.
    # Layer 1 only ever reads columns [:Cin], so the untouched columns of the
    # valid rows never feed a matmul with non-zero weights.
    pbuf[:, H:H + T, :Cin] = x_ref[...]

    def conv_layer(w_ref, b_ref, cin, store):
        K = w_ref.shape[0]
        p = (K - 1) // 2
        acc = None
        for k in range(K):                                  # static unroll, K = 3 or 5
            rows = pbuf[:, H - p + k:H - p + k + T, :cin]   # (BB, T, cin)
            part = jnp.dot(rows.reshape(R, cin).astype(w_ref.dtype), w_ref[k],
                           preferred_element_type=jnp.float32)
            acc = part if acc is None else acc + part
        h = _leaky(acc + b_ref[...])                        # (R, 128) f32
        if store:  # inter-layer hand-off: ONE aligned full-lane store
            pbuf[:, H:H + T, :] = h.reshape(BB, T, CW)
        return h

    conv_layer(w1_ref, b1_ref, Cin, store=True)             # Cin -> 64 (padded 128)
    conv_layer(w2_ref, b2_ref, CW, store=True)              # 64  -> 128
    h3 = conv_layer(w3_ref, b3_ref, CW, store=False)        # 128 -> 64 (padded 128)

    h4 = _leaky(jnp.dot(h3.astype(f1_ref.dtype), f1_ref[...],
                        preferred_element_type=jnp.float32) + bf1_ref[...])
    # TODO(synk): Dropout(p=0.3) skipped — inference/eval semantics (identity).
    y = jnp.dot(h4.astype(f2_ref.dtype), f2_ref[...],
                preferred_element_type=jnp.float32) + bf2_ref[...]      # (R, 128)
    o_ref[...] = y[:, :O].reshape(BB, T, O)                 # store only O lanes to HBM


# ---------------------------------------------------------------------------
# Wrapper
# ---------------------------------------------------------------------------
def _pick_block_batch(B, T):
    """Pick BB | B with BB*T ~ 1024 rows; prefer >=2 grid steps if rows stay >=256."""
    divs = [d for d in range(1, B + 1) if B % d == 0]
    target = max(1, 1024 // max(T, 1))
    bb = max([d for d in divs if d <= target], default=1)
    if B // bb < 2:  # keep v7x's second TensorCore busy when it is cheap to do so
        smaller = [d for d in divs if d < bb and d * T >= 256]
        if smaller:
            bb = max(smaller)
    return bb


def cnn_sequential_forward(params, x_nct):
    """x_nct: (B, Cin, T), exactly like the PyTorch module input.
    Returns (B, T, output_size), matching the PyTorch forward output."""
    B, Cin, T = x_nct.shape
    O = params["w_f2"].shape[0]
    BB = _pick_block_batch(B, T)
    S = T + 2 * HALO
    grid = (B // BB,)

    # One-time (tiny) weight re-layouts; fused under jit.  Casting to
    # MATMUL_DTYPE happens host-side (no per-grid-step VPU casts of weights).
    def conv_taps(w, cin_pad):
        # PyTorch (Cout, Cin, K) -> (K, cin_pad, 128), tap-major, zero padded.
        Co, Ci, K = w.shape
        wt = jnp.transpose(w, (2, 1, 0)).astype(jnp.float32)
        wt = jnp.pad(wt, ((0, 0), (0, cin_pad - Ci), (0, LANE - Co)))
        return wt.astype(MATMUL_DTYPE)

    def pad_bias(b):
        return jnp.pad(b.astype(jnp.float32), (0, LANE - b.shape[0])).reshape(1, LANE)

    w1 = conv_taps(params["w_c1"], Cin)        # (5, Cin, 128)
    w2 = conv_taps(params["w_c2"], LANE)       # (5, 128, 128)
    w3 = conv_taps(params["w_c3"], LANE)       # (3, 128, 128)
    b1 = pad_bias(params["b_c1"])
    b2 = pad_bias(params["b_c2"])
    b3 = pad_bias(params["b_c3"])

    Hf = params["w_f1"].shape[0]               # 32
    Cf = params["w_f1"].shape[1]               # 64
    f1 = jnp.pad(params["w_f1"].T.astype(jnp.float32),
                 ((0, LANE - Cf), (0, 0))).astype(MATMUL_DTYPE)       # (128, 32)
    bf1 = params["b_f1"].reshape(1, Hf).astype(jnp.float32)
    f2 = jnp.pad(params["w_f2"].T.astype(jnp.float32),
                 ((0, 0), (0, LANE - O))).astype(MATMUL_DTYPE)        # (32, 128)
    bf2 = pad_bias(params["b_f2"])

    # NCT -> NTC once (single cheap pass over the smallest tensor).
    x = jnp.transpose(x_nct, (0, 2, 1)).astype(jnp.float32)           # (B, T, Cin)

    c3 = lambda i: (0, 0, 0)
    c2 = lambda i: (0, 0)
    out = pl.pallas_call(
        fused_cnn_kernel,
        out_shape=jax.ShapeDtypeStruct((B, T, O), jnp.float32),
        grid=grid,
        in_specs=[
            pl.BlockSpec((BB, T, Cin), lambda i: (i, 0, 0)),
            pl.BlockSpec(w1.shape, c3), pl.BlockSpec(b1.shape, c2),
            pl.BlockSpec(w2.shape, c3), pl.BlockSpec(b2.shape, c2),
            pl.BlockSpec(w3.shape, c3), pl.BlockSpec(b3.shape, c2),
            pl.BlockSpec(f1.shape, c2), pl.BlockSpec(bf1.shape, c2),
            pl.BlockSpec(f2.shape, c2), pl.BlockSpec(bf2.shape, c2),
        ],
        out_specs=pl.BlockSpec((BB, T, O), lambda i: (i, 0, 0)),
        scratch_shapes=[pltpu.VMEM((BB, S, LANE), jnp.float32)],      # halo buffer
        compiler_params=pltpu.CompilerParams(
            dimension_semantics=("parallel",),
            vmem_limit_bytes=32 * 1024 * 1024,
        ),
    )(x, w1, b1, w2, b2, w3, b3, f1, bf1, f2, bf2)

    # TODO(synk): for very large T, tile the time axis with a HALO-row overlap
    # (and single-buffer the constant weight specs) to fit v7x's 64 MiB VMEM.
    return out


# ---------------------------------------------------------------------------
# Params (PyTorch-layout shapes) and pure-JAX reference
# ---------------------------------------------------------------------------
def init_params(key, input_channels, output_size):
    ks = jax.random.split(key, 10)

    def u(k, shape, fan_in):
        bound = 1.0 / jnp.sqrt(fan_in)
        return jax.random.uniform(k, shape, jnp.float32, -bound, bound)

    return {
        "w_c1": u(ks[0], (64, input_channels, 5), input_channels * 5),
        "b_c1": u(ks[1], (64,), input_channels * 5),
        "w_c2": u(ks[2], (128, 64, 5), 64 * 5),
        "b_c2": u(ks[3], (128,), 64 * 5),
        "w_c3": u(ks[4], (64, 128, 3), 128 * 3),
        "b_c3": u(ks[5], (64,), 128 * 3),
        "w_f1": u(ks[6], (32, 64), 64),
        "b_f1": u(ks[7], (32,), 64),
        "w_f2": u(ks[8], (output_size, 32), 32),
        "b_f2": u(ks[9], (output_size,), 32),
    }


def reference_forward(params, x_nct):
    def conv1d(x, w, b):
        pad = (w.shape[2] - 1) // 2
        y = jax.lax.conv_general_dilated(
            x, w, window_strides=(1,), padding=[(pad, pad)],
            dimension_numbers=("NCH", "OIH", "NCH"))
        return y + b[None, :, None]

    x = x_nct.astype(jnp.float32)
    x = _leaky(conv1d(x, params["w_c1"], params["b_c1"]))
    x = _leaky(conv1d(x, params["w_c2"], params["b_c2"]))
    x = _leaky(conv1d(x, params["w_c3"], params["b_c3"]))
    x = jnp.transpose(x, (0, 2, 1))                                   # (B, T, 64)
    x = _leaky(x @ params["w_f1"].T + params["b_f1"])
    return x @ params["w_f2"].T + params["b_f2"]


if __name__ == "__main__":
    B, C_IN, T, OUT = 2, 4, 16, 6

    key = jax.random.PRNGKey(0)
    k_x, k_p = jax.random.split(key)
    x = jax.random.normal(k_x, (B, C_IN, T), jnp.float32)             # NCT input
    params = init_params(k_p, C_IN, OUT)

    out = jax.jit(cnn_sequential_forward)(params, x)
    out = jax.block_until_ready(out)

    ref = reference_forward(params, x)
    assert out.shape == (B, T, OUT), out.shape
    max_err = float(jnp.max(jnp.abs(out - ref)))
    assert jnp.allclose(out, ref, rtol=1e-4, atol=1e-4), max_err

    print("KERNEL_OK")
</pallas_src>

<mosaic_0001>
module attributes {stable_mosaic.version = 11 : i64} {
  func.func @fused_cnn_kernel(%arg0: i32, %arg1: memref<2x16x4xf32, #tpu.memory_space<vmem>>, %arg2: memref<5x4x128xf32, #tpu.memory_space<vmem>>, %arg3: memref<1x128xf32, #tpu.memory_space<vmem>>, %arg4: memref<5x128x128xf32, #tpu.memory_space<vmem>>, %arg5: memref<1x128xf32, #tpu.memory_space<vmem>>, %arg6: memref<3x128x128xf32, #tpu.memory_space<vmem>>, %arg7: memref<1x128xf32, #tpu.memory_space<vmem>>, %arg8: memref<128x32xf32, #tpu.memory_space<vmem>>, %arg9: memref<1x32xf32, #tpu.memory_space<vmem>>, %arg10: memref<32x128xf32, #tpu.memory_space<vmem>>, %arg11: memref<1x128xf32, #tpu.memory_space<vmem>>, %arg12: memref<2x16x6xf32, #tpu.memory_space<vmem>>, %arg13: memref<2x32x128xf32, #tpu.memory_space<vmem>>) attributes {dimension_semantics = [#tpu.dimension_semantics<parallel>], iteration_bounds = array<i64: 1>, scalar_prefetch = 0 : i64, scratch_operands = 1 : i64, tpu.core_type = #tpu.core_type<tc>, window_params = [{transform_indices = @transform_0, window_bounds = array<i64: 2, 16, 4>}, {pipeline_mode = #tpu.pipeline_mode<synchronous>, transform_indices = @transform_1, window_bounds = array<i64: 5, 4, 128>}, {pipeline_mode = #tpu.pipeline_mode<synchronous>, transform_indices = @transform_2, window_bounds = array<i64: 1, 128>}, {pipeline_mode = #tpu.pipeline_mode<synchronous>, transform_indices = @transform_3, window_bounds = array<i64: 5, 128, 128>}, {pipeline_mode = #tpu.pipeline_mode<synchronous>, transform_indices = @transform_4, window_bounds = array<i64: 1, 128>}, {pipeline_mode = #tpu.pipeline_mode<synchronous>, transform_indices = @transform_5, window_bounds = array<i64: 3, 128, 128>}, {pipeline_mode = #tpu.pipeline_mode<synchronous>, transform_indices = @transform_6, window_bounds = array<i64: 1, 128>}, {pipeline_mode = #tpu.pipeline_mode<synchronous>, transform_indices = @transform_7, window_bounds = array<i64: 128, 32>}, {pipeline_mode = #tpu.pipeline_mode<synchronous>, transform_indices = @transform_8, window_bounds = array<i64: 1, 32>}, {pipeline_mode = #tpu.pipeline_mode<synchronous>, transform_indices = @transform_9, window_bounds = array<i64: 32, 128>}, {pipeline_mode = #tpu.pipeline_mode<synchronous>, transform_indices = @transform_10, window_bounds = array<i64: 1, 128>}, {transform_indices = @transform_11, window_bounds = array<i64: 2, 16, 6>}]} {
    %cst = arith.constant 0.000000e+00 : f32
    %0 = vector.broadcast %cst : f32 to vector<2x8x128xf32>
    %c0 = arith.constant 0 : index
    %c0_0 = arith.constant 0 : index
    %c0_1 = arith.constant 0 : index
    %1 = vector.load %arg13[%c0, %c0_0, %c0_1] : memref<2x32x128xf32, #tpu.memory_space<vmem>>, vector<2x8x128xf32>
    tpu.vector_store %arg13[%c0, %c0_0, %c0_1], %0 {strides = array<i32>} : memref<2x32x128xf32, #tpu.memory_space<vmem>>, vector<2x8x128xf32>,
    %cst_2 = arith.constant 0.000000e+00 : f32
    %2 = vector.broadcast %cst_2 : f32 to vector<2x8x128xf32>
    %c0_3 = arith.constant 0 : index
    %c24 = arith.constant 24 : index
    %c0_4 = arith.constant 0 : index
    %3 = vector.load %arg13[%c0_3, %c24, %c0_4] : memref<2x32x128xf32, #tpu.memory_space<vmem>>, vector<2x8x128xf32>
    tpu.vector_store %arg13[%c0_3, %c24, %c0_4], %2 {strides = array<i32>} : memref<2x32x128xf32, #tpu.memory_space<vmem>>, vector<2x8x128xf32>,
    %c0_5 = arith.constant 0 : index
    %c0_6 = arith.constant 0 : index
    %c0_7 = arith.constant 0 : index
    %4 = vector.load %arg1[%c0_5, %c0_6, %c0_7] : memref<2x16x4xf32, #tpu.memory_space<vmem>>, vector<2x16x4xf32>
    %c0_8 = arith.constant 0 : index
    %c8 = arith.constant 8 : index
    %c0_9 = arith.constant 0 : index
    %5 = vector.load %arg13[%c0_8, %c8, %c0_9] : memref<2x32x128xf32, #tpu.memory_space<vmem>>, vector<2x16x4xf32>
    tpu.vector_store %arg13[%c0_8, %c8, %c0_9], %4 {strides = array<i32>} : memref<2x32x128xf32, #tpu.memory_space<vmem>>, vector<2x16x4xf32>,
    %c0_10 = arith.constant 0 : index
    %c6 = arith.constant 6 : index
    %c0_11 = arith.constant 0 : index
    %6 = vector.load %arg13[%c0_10, %c6, %c0_11] : memref<2x32x128xf32, #tpu.memory_space<vmem>>, vector<2x16x4xf32>
    %7 = vector.shape_cast %6 : vector<2x16x4xf32> to vector<32x4xf32>
    %c0_12 = arith.constant 0 : index
    %c0_13 = arith.constant 0 : index
    %c0_14 = arith.constant 0 : index
    %8 = vector.load %arg2[%c0_12, %c0_13, %c0_14] : memref<5x4x128xf32, #tpu.memory_space<vmem>>, vector<1x4x128xf32>
    %9 = vector.shape_cast %8 : vector<1x4x128xf32> to vector<4x128xf32>
    %cst_15 = arith.constant dense<0.000000e+00> : vector<32x128xf32>
    %10 = tpu.matmul %7, %9, %cst_15 {dimension_numbers = #tpu.dot_dimension_numbers<[1], [0], [0], [1], [0, 0, 1, 1], [], []>} : vector<32x4xf32>, vector<4x128xf32>, vector<32x128xf32> -> vector<32x128xf32>
    %c0_16 = arith.constant 0 : index
    %c7 = arith.constant 7 : index
    %c0_17 = arith.constant 0 : index
    %11 = vector.load %arg13[%c0_16, %c7, %c0_17] : memref<2x32x128xf32, #tpu.memory_space<vmem>>, vector<2x16x4xf32>
    %12 = vector.shape_cast %11 : vector<2x16x4xf32> to vector<32x4xf32>
    %c1 = arith.constant 1 : index
    %c0_18 = arith.constant 0 : index
    %c0_19 = arith.constant 0 : index
    %13 = vector.load %arg2[%c1, %c0_18, %c0_19] : memref<5x4x128xf32, #tpu.memory_space<vmem>>, vector<1x4x128xf32>
    %14 = vector.shape_cast %13 : vector<1x4x128xf32> to vector<4x128xf32>
    %cst_20 = arith.constant dense<0.000000e+00> : vector<32x128xf32>
    %15 = tpu.matmul %12, %14, %cst_20 {dimension_numbers = #tpu.dot_dimension_numbers<[1], [0], [0], [1], [0, 0, 1, 1], [], []>} : vector<32x4xf32>, vector<4x128xf32>, vector<32x128xf32> -> vector<32x128xf32>
    %16 = arith.addf %10, %15 : vector<32x128xf32>
    %c0_21 = arith.constant 0 : index
    %c8_22 = arith.constant 8 : index
    %c0_23 = arith.constant 0 : index
    %17 = vector.load %arg13[%c0_21, %c8_22, %c0_23] : memref<2x32x128xf32, #tpu.memory_space<vmem>>, vector<2x16x4xf32>
    %18 = vector.shape_cast %17 : vector<2x16x4xf32> to vector<32x4xf32>
    %c2 = arith.constant 2 : index
    %c0_24 = arith.constant 0 : index
    %c0_25 = arith.constant 0 : index
    %19 = vector.load %arg2[%c2, %c0_24, %c0_25] : memref<5x4x128xf32, #tpu.memory_space<vmem>>, vector<1x4x128xf32>
    %20 = vector.shape_cast %19 : vector<1x4x128xf32> to vector<4x128xf32>
    %cst_26 = arith.constant dense<0.000000e+00> : vector<32x128xf32>
    %21 = tpu.matmul %18, %20, %cst_26 {dimension_numbers = #tpu.dot_dimension_numbers<[1], [0], [0], [1], [0, 0, 1, 1], [], []>} : vector<32x4xf32>, vector<4x128xf32>, vector<32x128xf32> -> vector<32x128xf32>
    %22 = arith.addf %16, %21 : vector<32x128xf32>
    %c0_27 = arith.constant 0 : index
    %c9 = arith.constant 9 : index
    %c0_28 = arith.constant 0 : index
    %23 = vector.load %arg13[%c0_27, %c9, %c0_28] : memref<2x32x128xf32, #tpu.memory_space<vmem>>, vector<2x16x4xf32>
    %24 = vector.shape_cast %23 : vector<2x16x4xf32> to vector<32x4xf32>
    %c3 = arith.constant 3 : index
    %c0_29 = arith.constant 0 : index
    %c0_30 = arith.constant 0 : index
    %25 = vector.load %arg2[%c3, %c0_29, %c0_30] : memref<5x4x128xf32, #tpu.memory_space<vmem>>, vector<1x4x128xf32>
    %26 = vector.shape_cast %25 : vector<1x4x128xf32> to vector<4x128xf32>
    %cst_31 = arith.constant dense<0.000000e+00> : vector<32x128xf32>
    %27 = tpu.matmul %24, %26, %cst_31 {dimension_numbers = #tpu.dot_dimension_numbers<[1], [0], [0], [1], [0, 0, 1, 1], [], []>} : vector<32x4xf32>, vector<4x128xf32>, vector<32x128xf32> -> vector<32x128xf32>
    %28 = arith.addf %22, %27 : vector<32x128xf32>
    %c0_32 = arith.constant 0 : index
    %c10 = arith.constant 10 : index
    %c0_33 = arith.constant 0 : index
    %29 = vector.load %arg13[%c0_32, %c10, %c0_33] : memref<2x32x128xf32, #tpu.memory_space<vmem>>, vector<2x16x4xf32>
    %30 = vector.shape_cast %29 : vector<2x16x4xf32> to vector<32x4xf32>
    %c4 = arith.constant 4 : index
    %c0_34 = arith.constant 0 : index
    %c0_35 = arith.constant 0 : index
    %31 = vector.load %arg2[%c4, %c0_34, %c0_35] : memref<5x4x128xf32, #tpu.memory_space<vmem>>, vector<1x4x128xf32>
    %32 = vector.shape_cast %31 : vector<1x4x128xf32> to vector<4x128xf32>
    %cst_36 = arith.constant dense<0.000000e+00> : vector<32x128xf32>
    %33 = tpu.matmul %30, %32, %cst_36 {dimension_numbers = #tpu.dot_dimension_numbers<[1], [0], [0], [1], [0, 0, 1, 1], [], []>} : vector<32x4xf32>, vector<4x128xf32>, vector<32x128xf32> -> vector<32x128xf32>
    %34 = arith.addf %28, %33 : vector<32x128xf32>
    %c0_37 = arith.constant 0 : index
    %c0_38 = arith.constant 0 : index
    %35 = vector.load %arg3[%c0_37, %c0_38] : memref<1x128xf32, #tpu.memory_space<vmem>>, vector<1x128xf32>
    %36 = vector.broadcast %35 : vector<1x128xf32> to vector<32x128xf32>
    %37 = arith.addf %34, %36 : vector<32x128xf32>
    %cst_39 = arith.constant 0.000000e+00 : f32
    %38 = vector.broadcast %cst_39 : f32 to vector<32x128xf32>
    %39 = arith.cmpf ogt, %37, %38 : vector<32x128xf32>
    %cst_40 = arith.constant 0.00999999977 : f32
    %40 = vector.broadcast %cst_40 : f32 to vector<32x128xf32>
    %41 = arith.mulf %40, %37 : vector<32x128xf32>
    %42 = arith.select %39, %37, %41 : vector<32x128xi1>, vector<32x128xf32>
    %43 = vector.shape_cast %42 : vector<32x128xf32> to vector<2x16x128xf32>
    %c0_41 = arith.constant 0 : index
    %c8_42 = arith.constant 8 : index
    %c0_43 = arith.constant 0 : index
    %44 = vector.load %arg13[%c0_41, %c8_42, %c0_43] : memref<2x32x128xf32, #tpu.memory_space<vmem>>, vector<2x16x128xf32>
    tpu.vector_store %arg13[%c0_41, %c8_42, %c0_43], %43 {strides = array<i32>} : memref<2x32x128xf32, #tpu.memory_space<vmem>>, vector<2x16x128xf32>,
    %c0_44 = arith.constant 0 : index
    %c6_45 = arith.constant 6 : index
    %c0_46 = arith.constant 0 : index
    %45 = vector.load %arg13[%c0_44, %c6_45, %c0_46] : memref<2x32x128xf32, #tpu.memory_space<vmem>>, vector<2x16x128xf32>
    %46 = vector.shape_cast %45 : vector<2x16x128xf32> to vector<32x128xf32>
    %c0_47 = arith.constant 0 : index
    %c0_48 = arith.constant 0 : index
    %c0_49 = arith.constant 0 : index
    %47 = vector.load %arg4[%c0_47, %c0_48, %c0_49] : memref<5x128x128xf32, #tpu.memory_space<vmem>>, vector<1x128x128xf32>
    %48 = vector.shape_cast %47 : vector<1x128x128xf32> to vector<128x128xf32>
    %cst_50 = arith.constant dense<0.000000e+00> : vector<32x128xf32>
    %49 = tpu.matmul %46, %48, %cst_50 {dimension_numbers = #tpu.dot_dimension_numbers<[1], [0], [0], [1], [0, 0, 1, 1], [], []>} : vector<32x128xf32>, vector<128x128xf32>, vector<32x128xf32> -> vector<32x128xf32>
    %c0_51 = arith.constant 0 : index
    %c7_52 = arith.constant 7 : index
    %c0_53 = arith.constant 0 : index
    %50 = vector.load %arg13[%c0_51, %c7_52, %c0_53] : memref<2x32x128xf32, #tpu.memory_space<vmem>>, vector<2x16x128xf32>
    %51 = vector.shape_cast %50 : vector<2x16x128xf32> to vector<32x128xf32>
    %c1_54 = arith.constant 1 : index
    %c0_55 = arith.constant 0 : index
    %c0_56 = arith.constant 0 : index
    %52 = vector.load %arg4[%c1_54, %c0_55, %c0_56] : memref<5x128x128xf32, #tpu.memory_space<vmem>>, vector<1x128x128xf32>
    %53 = vector.shape_cast %52 : vector<1x128x128xf32> to vector<128x128xf32>
    %cst_57 = arith.constant dense<0.000000e+00> : vector<32x128xf32>
    %54 = tpu.matmul %51, %53, %cst_57 {dimension_numbers = #tpu.dot_dimension_numbers<[1], [0], [0], [1], [0, 0, 1, 1], [], []>} : vector<32x128xf32>, vector<128x128xf32>, vector<32x128xf32> -> vector<32x128xf32>
    %55 = arith.addf %49, %54 : vector<32x128xf32>
    %c0_58 = arith.constant 0 : index
    %c8_59 = arith.constant 8 : index
    %c0_60 = arith.constant 0 : index
    %56 = vector.load %arg13[%c0_58, %c8_59, %c0_60] : memref<2x32x128xf32, #tpu.memory_space<vmem>>, vector<2x16x128xf32>
    %57 = vector.shape_cast %56 : vector<2x16x128xf32> to vector<32x128xf32>
    %c2_61 = arith.constant 2 : index
    %c0_62 = arith.constant 0 : index
    %c0_63 = arith.constant 0 : index
    %58 = vector.load %arg4[%c2_61, %c0_62, %c0_63] : memref<5x128x128xf32, #tpu.memory_space<vmem>>, vector<1x128x128xf32>
    %59 = vector.shape_cast %58 : vector<1x128x128xf32> to vector<128x128xf32>
    %cst_64 = arith.constant dense<0.000000e+00> : vector<32x128xf32>
    %60 = tpu.matmul %57, %59, %cst_64 {dimension_numbers = #tpu.dot_dimension_numbers<[1], [0], [0], [1], [0, 0, 1, 1], [], []>} : vector<32x128xf32>, vector<128x128xf32>, vector<32x128xf32> -> vector<32x128xf32>
    %61 = arith.addf %55, %60 : vector<32x128xf32>
    %c0_65 = arith.constant 0 : index
    %c9_66 = arith.constant 9 : index
    %c0_67 = arith.constant 0 : index
    %62 = vector.load %arg13[%c0_65, %c9_66, %c0_67] : memref<2x32x128xf32, #tpu.memory_space<vmem>>, vector<2x16x128xf32>
    %63 = vector.shape_cast %62 : vector<2x16x128xf32> to vector<32x128xf32>
    %c3_68 = arith.constant 3 : index
    %c0_69 = arith.constant 0 : index
    %c0_70 = arith.constant 0 : index
    %64 = vector.load %arg4[%c3_68, %c0_69, %c0_70] : memref<5x128x128xf32, #tpu.memory_space<vmem>>, vector<1x128x128xf32>
    %65 = vector.shape_cast %64 : vector<1x128x128xf32> to vector<128x128xf32>
    %cst_71 = arith.constant dense<0.000000e+00> : vector<32x128xf32>
    %66 = tpu.matmul %63, %65, %cst_71 {dimension_numbers = #tpu.dot_dimension_numbers<[1], [0], [0], [1], [0, 0, 1, 1], [], []>} : vector<32x128xf32>, vector<128x128xf32>, vector<32x128xf32> -> vector<32x128xf32>
    %67 = arith.addf %61, %66 : vector<32x128xf32>
    %c0_72 = arith.constant 0 : index
    %c10_73 = arith.constant 10 : index
    %c0_74 = arith.constant 0 : index
    %68 = vector.load %arg13[%c0_72, %c10_73, %c0_74] : memref<2x32x128xf32, #tpu.memory_space<vmem>>, vector<2x16x128xf32>
    %69 = vector.shape_cast %68 : vector<2x16x128xf32> to vector<32x128xf32>
    %c4_75 = arith.constant 4 : index
    %c0_76 = arith.constant 0 : index
    %c0_77 = arith.constant 0 : index
    %70 = vector.load %arg4[%c4_75, %c0_76, %c0_77] : memref<5x128x128xf32, #tpu.memory_space<vmem>>, vector<1x128x128xf32>
    %71 = vector.shape_cast %70 : vector<1x128x128xf32> to vector<128x128xf32>
    %cst_78 = arith.constant dense<0.000000e+00> : vector<32x128xf32>
    %72 = tpu.matmul %69, %71, %cst_78 {dimension_numbers = #tpu.dot_dimension_numbers<[1], [0], [0], [1], [0, 0, 1, 1], [], []>} : vector<32x128xf32>, vector<128x128xf32>, vector<32x128xf32> -> vector<32x128xf32>
    %73 = arith.addf %67, %72 : vector<32x128xf32>
    %c0_79 = arith.constant 0 : index
    %c0_80 = arith.constant 0 : index
    %74 = vector.load %arg5[%c0_79, %c0_80] : memref<1x128xf32, #tpu.memory_space<vmem>>, vector<1x128xf32>
    %75 = vector.broadcast %74 : vector<1x128xf32> to vector<32x128xf32>
    %76 = arith.addf %73, %75 : vector<32x128xf32>
    %cst_81 = arith.constant 0.000000e+00 : f32
    %77 = vector.broadcast %cst_81 : f32 to vector<32x128xf32>
    %78 = arith.cmpf ogt, %76, %77 : vector<32x128xf32>
    %cst_82 = arith.constant 0.00999999977 : f32
    %79 = vector.broadcast %cst_82 : f32 to vector<32x128xf32>
    %80 = arith.mulf %79, %76 : vector<32x128xf32>
    %81 = arith.select %78, %76, %80 : vector<32x128xi1>, vector<32x128xf32>
    %82 = vector.shape_cast %81 : vector<32x128xf32> to vector<2x16x128xf32>
    %c0_83 = arith.constant 0 : index
    %c8_84 = arith.constant 8 : index
    %c0_85 = arith.constant 0 : index
    %83 = vector.load %arg13[%c0_83, %c8_84, %c0_85] : memref<2x32x128xf32, #tpu.memory_space<vmem>>, vector<2x16x128xf32>
    tpu.vector_store %arg13[%c0_83, %c8_84, %c0_85], %82 {strides = array<i32>} : memref<2x32x128xf32, #tpu.memory_space<vmem>>, vector<2x16x128xf32>,
    %c0_86 = arith.constant 0 : index
    %c7_87 = arith.constant 7 : index
    %c0_88 = arith.constant 0 : index
    %84 = vector.load %arg13[%c0_86, %c7_87, %c0_88] : memref<2x32x128xf32, #tpu.memory_space<vmem>>, vector<2x16x128xf32>
    %85 = vector.shape_cast %84 : vector<2x16x128xf32> to vector<32x128xf32>
    %c0_89 = arith.constant 0 : index
    %c0_90 = arith.constant 0 : index
    %c0_91 = arith.constant 0 : index
    %86 = vector.load %arg6[%c0_89, %c0_90, %c0_91] : memref<3x128x128xf32, #tpu.memory_space<vmem>>, vector<1x128x128xf32>
    %87 = vector.shape_cast %86 : vector<1x128x128xf32> to vector<128x128xf32>
    %cst_92 = arith.constant dense<0.000000e+00> : vector<32x128xf32>
    %88 = tpu.matmul %85, %87, %cst_92 {dimension_numbers = #tpu.dot_dimension_numbers<[1], [0], [0], [1], [0, 0, 1, 1], [], []>} : vector<32x128xf32>, vector<128x128xf32>, vector<32x128xf32> -> vector<32x128xf32>
    %c0_93 = arith.constant 0 : index
    %c8_94 = arith.constant 8 : index
    %c0_95 = arith.constant 0 : index
    %89 = vector.load %arg13[%c0_93, %c8_94, %c0_95] : memref<2x32x128xf32, #tpu.memory_space<vmem>>, vector<2x16x128xf32>
    %90 = vector.shape_cast %89 : vector<2x16x128xf32> to vector<32x128xf32>
    %c1_96 = arith.constant 1 : index
    %c0_97 = arith.constant 0 : index
    %c0_98 = arith.constant 0 : index
    %91 = vector.load %arg6[%c1_96, %c0_97, %c0_98] : memref<3x128x128xf32, #tpu.memory_space<vmem>>, vector<1x128x128xf32>
    %92 = vector.shape_cast %91 : vector<1x128x128xf32> to vector<128x128xf32>
    %cst_99 = arith.constant dense<0.000000e+00> : vector<32x128xf32>
    %93 = tpu.matmul %90, %92, %cst_99 {dimension_numbers = #tpu.dot_dimension_numbers<[1], [0], [0], [1], [0, 0, 1, 1], [], []>} : vector<32x128xf32>, vector<128x128xf32>, vector<32x128xf32> -> vector<32x128xf32>
    %94 = arith.addf %88, %93 : vector<32x128xf32>
    %c0_100 = arith.constant 0 : index
    %c9_101 = arith.constant 9 : index
    %c0_102 = arith.constant 0 : index
    %95 = vector.load %arg13[%c0_100, %c9_101, %c0_102] : memref<2x32x128xf32, #tpu.memory_space<vmem>>, vector<2x16x128xf32>
    %96 = vector.shape_cast %95 : vector<2x16x128xf32> to vector<32x128xf32>
    %c2_103 = arith.constant 2 : index
    %c0_104 = arith.constant 0 : index
    %c0_105 = arith.constant 0 : index
    %97 = vector.load %arg6[%c2_103, %c0_104, %c0_105] : memref<3x128x128xf32, #tpu.memory_space<vmem>>, vector<1x128x128xf32>
    %98 = vector.shape_cast %97 : vector<1x128x128xf32> to vector<128x128xf32>
    %cst_106 = arith.constant dense<0.000000e+00> : vector<32x128xf32>
    %99 = tpu.matmul %96, %98, %cst_106 {dimension_numbers = #tpu.dot_dimension_numbers<[1], [0], [0], [1], [0, 0, 1, 1], [], []>} : vector<32x128xf32>, vector<128x128xf32>, vector<32x128xf32> -> vector<32x128xf32>
    %100 = arith.addf %94, %99 : vector<32x128xf32>
    %c0_107 = arith.constant 0 : index
    %c0_108 = arith.constant 0 : index
    %101 = vector.load %arg7[%c0_107, %c0_108] : memref<1x128xf32, #tpu.memory_space<vmem>>, vector<1x128xf32>
    %102 = vector.broadcast %101 : vector<1x128xf32> to vector<32x128xf32>
    %103 = arith.addf %100, %102 : vector<32x128xf32>
    %cst_109 = arith.constant 0.000000e+00 : f32
    %104 = vector.broadcast %cst_109 : f32 to vector<32x128xf32>
    %105 = arith.cmpf ogt, %103, %104 : vector<32x128xf32>
    %cst_110 = arith.constant 0.00999999977 : f32
    %106 = vector.broadcast %cst_110 : f32 to vector<32x128xf32>
    %107 = arith.mulf %106, %103 : vector<32x128xf32>
    %108 = arith.select %105, %103, %107 : vector<32x128xi1>, vector<32x128xf32>
    %c0_111 = arith.constant 0 : index
    %c0_112 = arith.constant 0 : index
    %109 = vector.load %arg8[%c0_111, %c0_112] : memref<128x32xf32, #tpu.memory_space<vmem>>, vector<128x32xf32>
    %cst_113 = arith.constant dense<0.000000e+00> : vector<32x32xf32>
    %110 = tpu.matmul %108, %109, %cst_113 {dimension_numbers = #tpu.dot_dimension_numbers<[1], [0], [0], [1], [0, 0, 1, 1], [], []>} : vector<32x128xf32>, vector<128x32xf32>, vector<32x32xf32> -> vector<32x32xf32>
    %c0_114 = arith.constant 0 : index
    %c0_115 = arith.constant 0 : index
    %111 = vector.load %arg9[%c0_114, %c0_115] : memref<1x32xf32, #tpu.memory_space<vmem>>, vector<1x32xf32>
    %112 = vector.broadcast %111 : vector<1x32xf32> to vector<32x32xf32>
    %113 = arith.addf %110, %112 : vector<32x32xf32>
    %cst_116 = arith.constant 0.000000e+00 : f32
    %114 = vector.broadcast %cst_116 : f32 to vector<32x32xf32>
    %115 = arith.cmpf ogt, %113, %114 : vector<32x32xf32>
    %cst_117 = arith.constant 0.00999999977 : f32
    %116 = vector.broadcast %cst_117 : f32 to vector<32x32xf32>
    %117 = arith.mulf %116, %113 : vector<32x32xf32>
    %118 = arith.select %115, %113, %117 : vector<32x32xi1>, vector<32x32xf32>
    %c0_118 = arith.constant 0 : index
    %c0_119 = arith.constant 0 : index
    %119 = vector.load %arg10[%c0_118, %c0_119] : memref<32x128xf32, #tpu.memory_space<vmem>>, vector<32x128xf32>
    %cst_120 = arith.constant dense<0.000000e+00> : vector<32x128xf32>
    %120 = tpu.matmul %118, %119, %cst_120 {dimension_numbers = #tpu.dot_dimension_numbers<[1], [0], [0], [1], [0, 0, 1, 1], [], []>} : vector<32x32xf32>, vector<32x128xf32>, vector<32x128xf32> -> vector<32x128xf32>
    %c0_121 = arith.constant 0 : index
    %c0_122 = arith.constant 0 : index
    %121 = vector.load %arg11[%c0_121, %c0_122] : memref<1x128xf32, #tpu.memory_space<vmem>>, vector<1x128xf32>
    %122 = vector.broadcast %121 : vector<1x128xf32> to vector<32x128xf32>
    %123 = arith.addf %120, %122 : vector<32x128xf32>
    %124 = vector.extract_strided_slice %123 {offsets = [0, 0], sizes = [32, 6], strides = [1, 1]} : vector<32x128xf32> to vector<32x6xf32>
    %125 = vector.shape_cast %124 : vector<32x6xf32> to vector<2x16x6xf32>
    %c0_123 = arith.constant 0 : index
    %c0_124 = arith.constant 0 : index
    %c0_125 = arith.constant 0 : index
    %126 = vector.load %arg12[%c0_123, %c0_124, %c0_125] : memref<2x16x6xf32, #tpu.memory_space<vmem>>, vector<2x16x6xf32>
    tpu.vector_store %arg12[%c0_123, %c0_124, %c0_125], %125 {strides = array<i32>} : memref<2x16x6xf32, #tpu.memory_space<vmem>>, vector<2x16x6xf32>,
    return
  }
  func.func @transform_0(%arg0: i32) -> (i32, i32, i32) {
    %c0_i32 = arith.constant 0 : i32
    %c0_i32_0 = arith.constant 0 : i32
    %c0_i32_1 = arith.constant 0 : i32
    return %arg0, %c0_i32, %c0_i32_0 : i32, i32, i32
  }
  func.func @transform_1(%arg0: i32) -> (i32, i32, i32) {
    %c0_i32 = arith.constant 0 : i32
    %c0_i32_0 = arith.constant 0 : i32
    %c0_i32_1 = arith.constant 0 : i32
    %c0_i32_2 = arith.constant 0 : i32
    return %c0_i32, %c0_i32_0, %c0_i32_1 : i32, i32, i32
  }
  func.func @transform_2(%arg0: i32) -> (i32, i32) {
    %c0_i32 = arith.constant 0 : i32
    %c0_i32_0 = arith.constant 0 : i32
    %c0_i32_1 = arith.constant 0 : i32
    return %c0_i32, %c0_i32_0 : i32, i32
  }
  func.func @transform_3(%arg0: i32) -> (i32, i32, i32) {
    %c0_i32 = arith.constant 0 : i32
    %c0_i32_0 = arith.constant 0 : i32
    %c0_i32_1 = arith.constant 0 : i32
    %c0_i32_2 = arith.constant 0 : i32
    return %c0_i32, %c0_i32_0, %c0_i32_1 : i32, i32, i32
  }
  func.func @transform_4(%arg0: i32) -> (i32, i32) {
    %c0_i32 = arith.constant 0 : i32
    %c0_i32_0 = arith.constant 0 : i32
    %c0_i32_1 = arith.constant 0 : i32
    return %c0_i32, %c0_i32_0 : i32, i32
  }
  func.func @transform_5(%arg0: i32) -> (i32, i32, i32) {
    %c0_i32 = arith.constant 0 : i32
    %c0_i32_0 = arith.constant 0 : i32
    %c0_i32_1 = arith.constant 0 : i32
    %c0_i32_2 = arith.constant 0 : i32
    return %c0_i32, %c0_i32_0, %c0_i32_1 : i32, i32, i32
  }
  func.func @transform_6(%arg0: i32) -> (i32, i32) {
    %c0_i32 = arith.constant 0 : i32
    %c0_i32_0 = arith.constant 0 : i32
    %c0_i32_1 = arith.constant 0 : i32
    return %c0_i32, %c0_i32_0 : i32, i32
  }
  func.func @transform_7(%arg0: i32) -> (i32, i32) {
    %c0_i32 = arith.constant 0 : i32
    %c0_i32_0 = arith.constant 0 : i32
    %c0_i32_1 = arith.constant 0 : i32
    return %c0_i32, %c0_i32_0 : i32, i32
  }
  func.func @transform_8(%arg0: i32) -> (i32, i32) {
    %c0_i32 = arith.constant 0 : i32
    %c0_i32_0 = arith.constant 0 : i32
    %c0_i32_1 = arith.constant 0 : i32
    return %c0_i32, %c0_i32_0 : i32, i32
  }
  func.func @transform_9(%arg0: i32) -> (i32, i32) {
    %c0_i32 = arith.constant 0 : i32
    %c0_i32_0 = arith.constant 0 : i32
    %c0_i32_1 = arith.constant 0 : i32
    return %c0_i32, %c0_i32_0 : i32, i32
  }
  func.func @transform_10(%arg0: i32) -> (i32, i32) {
    %c0_i32 = arith.constant 0 : i32
    %c0_i32_0 = arith.constant 0 : i32
    %c0_i32_1 = arith.constant 0 : i32
    return %c0_i32, %c0_i32_0 : i32, i32
  }
  func.func @transform_11(%arg0: i32) -> (i32, i32, i32) {
    %c0_i32 = arith.constant 0 : i32
    %c0_i32_0 = arith.constant 0 : i32
    %c0_i32_1 = arith.constant 0 : i32
    return %arg0, %c0_i32, %c0_i32_0 : i32, i32, i32
  }
}

</mosaic_0001>

<llo_original>
// kernel: cnn_sequential_forward.1
$region0: #{cnn_sequential_forward.1}
  #allocation0 [shape = 'u32[]', space=smem, size = 0x4, offset = 0x4, fixed_abs, tag = 'smem constant byte address 0x4 - core index']
  #allocation1 [shape = 'u32[144,128]{1,0:T(1,128)}', space=vmem, size = 0x12000, scoped, tag = 'internal scratch']
  #allocation2 [shape = 'f32[2,32,128]{2,1,0:T(8,128)}', space=vmem, size = 0x8000, scoped, tag = 'scratch operand']
  %s0 = inlined_call_operand.vmem [shape: f32[2,16,4], index: 0, kind: input, shape index: {}]
  %s1 = inlined_call_operand.vmem [shape: f32[5,4,128], index: 1, kind: input, shape index: {}]
  %s2 = inlined_call_operand.vmem [shape: f32[1,128], index: 2, kind: input, shape index: {}]
  %s3 = inlined_call_operand.vmem [shape: f32[5,128,128], index: 3, kind: input, shape index: {}]
  %s4 = inlined_call_operand.vmem [shape: f32[1,128], index: 4, kind: input, shape index: {}]
  %s5 = inlined_call_operand.vmem [shape: f32[3,128,128], index: 5, kind: input, shape index: {}]
  %s6 = inlined_call_operand.vmem [shape: f32[1,128], index: 6, kind: input, shape index: {}]
  %s7 = inlined_call_operand.vmem [shape: f32[128,32], index: 7, kind: input, shape index: {}]
  %s8 = inlined_call_operand.vmem [shape: f32[1,32], index: 8, kind: input, shape index: {}]
  %s9 = inlined_call_operand.vmem [shape: f32[32,128], index: 9, kind: input, shape index: {}]
  %s10 = inlined_call_operand.vmem [shape: f32[1,128], index: 10, kind: input, shape index: {}]
  %s11 = inlined_call_operand.vmem [shape: f32[2,16,6], index: 11, kind: output, shape index: {}]
  %s12 = sld [smem:[#allocation0]]
  $region54: #{cnn_sequential_forward.1} parent=0
    _
  %s14 = ssub.s32 1, %s12
  %s15 = scalar_select 0, %s14, %s12
  // Predicated region
  $region2: #{cnn_sequential_forward.1} parent=0 // pred_check
    _
  $region3: #{cnn_sequential_forward.1} parent=0 // pred_check_branch
    %17 = sbr.rel (0) target = $region5
  $region4: #{cnn_sequential_forward.1} parent=0 // pred_region
    _
  $region5: #{cnn_sequential_forward.1} parent=0 // pred_fallthru
    _
  // Predicated region
  $region6: #{cnn_sequential_forward.1} parent=0 // pred_check
    _
  $region7: #{cnn_sequential_forward.1} parent=0 // pred_check_branch
    %19 = sbr.rel (0) target = $region9
  $region8: #{cnn_sequential_forward.1} parent=0 // pred_region
    _
  $region9: #{cnn_sequential_forward.1} parent=0 // pred_fallthru
    _
  // Predicated region
  $region10: #{cnn_sequential_forward.1} parent=0 // pred_check
    _
  $region11: #{cnn_sequential_forward.1} parent=0 // pred_check_branch
    %21 = sbr.rel (0) target = $region13
  $region12: #{cnn_sequential_forward.1} parent=0 // pred_region
    _
  $region13: #{cnn_sequential_forward.1} parent=0 // pred_fallthru
    _
  // Predicated region
  $region14: #{cnn_sequential_forward.1} parent=0 // pred_check
    _
  $region15: #{cnn_sequential_forward.1} parent=0 // pred_check_branch
    %23 = sbr.rel (0) target = $region17
  $region16: #{cnn_sequential_forward.1} parent=0 // pred_region
    _
  $region17: #{cnn_sequential_forward.1} parent=0 // pred_fallthru
    _
  // Predicated region
  $region18: #{cnn_sequential_forward.1} parent=0 // pred_check
    _
  $region19: #{cnn_sequential_forward.1} parent=0 // pred_check_branch
    %25 = sbr.rel (0) target = $region21
  $region20: #{cnn_sequential_forward.1} parent=0 // pred_region
    _
  $region21: #{cnn_sequential_forward.1} parent=0 // pred_fallthru
    _
  // Predicated region
  $region22: #{cnn_sequential_forward.1} parent=0 // pred_check
    _
  $region23: #{cnn_sequential_forward.1} parent=0 // pred_check_branch
    %27 = sbr.rel (0) target = $region25
  $region24: #{cnn_sequential_forward.1} parent=0 // pred_region
    _
  $region25: #{cnn_sequential_forward.1} parent=0 // pred_fallthru
    _
  // Predicated region
  $region26: #{cnn_sequential_forward.1} parent=0 // pred_check
    _
  $region27: #{cnn_sequential_forward.1} parent=0 // pred_check_branch
    %29 = sbr.rel (0) target = $region29
  $region28: #{cnn_sequential_forward.1} parent=0 // pred_region
    _
  $region29: #{cnn_sequential_forward.1} parent=0 // pred_fallthru
    _
  // Predicated region
  $region30: #{cnn_sequential_forward.1} parent=0 // pred_check
    _
  $region31: #{cnn_sequential_forward.1} parent=0 // pred_check_branch
    %31 = sbr.rel (0) target = $region33
  $region32: #{cnn_sequential_forward.1} parent=0 // pred_region
    _
  $region33: #{cnn_sequential_forward.1} parent=0 // pred_fallthru
    _
  // Predicated region
  $region34: #{cnn_sequential_forward.1} parent=0 // pred_check
    _
  $region35: #{cnn_sequential_forward.1} parent=0 // pred_check_branch
    %33 = sbr.rel (0) target = $region37
  $region36: #{cnn_sequential_forward.1} parent=0 // pred_region
    _
  $region37: #{cnn_sequential_forward.1} parent=0 // pred_fallthru
    _
  // Predicated region
  $region38: #{cnn_sequential_forward.1} parent=0 // pred_check
    _
  $region39: #{cnn_sequential_forward.1} parent=0 // pred_check_branch
    %35 = sbr.rel (0) target = $region41
  $region40: #{cnn_sequential_forward.1} parent=0 // pred_region
    _
  $region41: #{cnn_sequential_forward.1} parent=0 // pred_fallthru
    _
  // Predicated region
  $region42: #{cnn_sequential_forward.1} parent=0 // pred_check
    _
  $region43: #{cnn_sequential_forward.1} parent=0 // pred_check_branch
    %37 = sbr.rel (0) target = $region45
  $region44: #{cnn_sequential_forward.1} parent=0 // pred_region
    _
  $region45: #{cnn_sequential_forward.1} parent=0 // pred_fallthru
    _
  %38 = vst [vmem:[#allocation2] sm:$0xff] 0.0
  %39 = vst [vmem:[#allocation2 + $0x20] sm:$0xff] 0.0
  %40 = vst [vmem:[#allocation2 + $0x18] sm:$0xff] 0.0
  %41 = vst [vmem:[#allocation2 + $0x38] sm:$0xff] 0.0
  %v42 = vld [vmem:[%s0] sm:$0xff]
  %v43 = vld [vmem:[%s0 + $0x8] sm:$0xff]
  %v44 = vld [vmem:[%s0 + $0x10] sm:$0xff]
  %v45 = vld [vmem:[%s0 + $0x18] sm:$0xff]
  %vm46 = vcmask 31744
  %47 = vst.msk [vmem:[#allocation2 + $0x8] sm:$0xff] %vm46, %v42
  %48 = vst.msk [vmem:[#allocation2 + $0x10] sm:$0xff] %vm46, %v43
  %49 = vst.msk [vmem:[#allocation2 + $0x28] sm:$0xff] %vm46, %v44
  %50 = vst.msk [vmem:[#allocation2 + $0x30] sm:$0xff] %vm46, %v45
  %v51 = vld [vmem:[#allocation2 + $0x6] sm:$0xff]
  %v52 = vld [vmem:[#allocation2 + $0xe] sm:$0xff]
  %v53 = vld [vmem:[#allocation2 + $0x26] sm:$0xff]
  %v54 = vld [vmem:[#allocation2 + $0x2e] sm:$0xff]
  %v55 = vld [vmem:[%s1] sm:$0xf]
  %v56 = vld [vmem:[#allocation2 + $0x7] sm:$0xff]
  %v57 = vld [vmem:[#allocation2 + $0xf] sm:$0xff]
  %v58 = vld [vmem:[#allocation2 + $0x27] sm:$0xff]
  %v59 = vld [vmem:[#allocation2 + $0x2f] sm:$0xff]
  %s60 = scalar_lea.vmem %s1, 4
  %v61 = vld [vmem:[%s60] sm:$0xf]
  %v63 = vsel %vm46, %v56, 0
  %v66 = vsel %vm46, %v57, 0
  %v69 = vsel %vm46, %v58, 0
  %v72 = vsel %vm46, %v59, 0
  %vm74 = vcmask 1043456
  %v76 = vsel %vm74, %v61, 0
  %78 = vmatprep.subr.mxu0 0.0
  %79 = vmatpush1.msra.mxu0 0.0
  %80 = vmatprep.subr.mxu0 0.0
  %81 = vmatpush1.msra.mxu0 0.0
  %82 = vmatprep.subr.mxu0 0.0
  %83 = vmatpush1.msra.mxu0 0.0
  %84 = vmatprep.subr.mxu0 0.0
  %85 = vmatpush1.msra.mxu0 0.0
  %86 = vmatprep.subr.mxu0 0.0
  %87 = vmatpush1.msra.mxu0 0.0
  %88 = vmatprep.subr.mxu0 0.0
  %89 = vmatpush1.msra.mxu0 0.0
  %90 = vmatprep.subr.mxu0 0.0
  %91 = vmatpush1.msra.mxu0 0.0
  %92 = vmatprep.subr.mxu0 0.0
  %93 = vmatpush1.msra.mxu0 0.0
  %94 = vmatprep.subr.mxu0 0.0
  %95 = vmatpush1.msra.mxu0 0.0
  %96 = vmatprep.subr.mxu0 0.0
  %97 = vmatpush1.msra.mxu0 0.0
  %98 = vmatprep.subr.mxu0 0.0
  %99 = vmatpush1.msra.mxu0 0.0
  %100 = vmatprep.subr.mxu0 0.0
  %101 = vmatpush1.msra.mxu0 0.0
  %102 = vmatprep.subr.mxu0 0.0
  %103 = vmatpush1.msra.mxu0 0.0
  %104 = vmatprep.subr.mxu0 0.0
  %105 = vmatpush1.msra.mxu0 0.0
  %106 = vmatprep.subr.mxu0 0.0
  %107 = vmatpush1.msra.mxu0 0.0
  %108 = vmatprep.subr.mxu0 0.0
  %109 = vmatpush1.msra.mxu0 %v76
  %110 = vmatprep.subr.mxu0 0.0
  %111 = vmatpush2.msra.mxu0 0.0
  %112 = vmatprep.subr.mxu0 0.0
  %113 = vmatpush2.msra.mxu0 0.0
  %114 = vmatprep.subr.mxu0 0.0
  %115 = vmatpush2.msra.mxu0 0.0
  %116 = vmatprep.subr.mxu0 0.0
  %117 = vmatpush2.msra.mxu0 0.0
  %118 = vmatprep.subr.mxu0 0.0
  %119 = vmatpush2.msra.mxu0 0.0
  %120 = vmatprep.subr.mxu0 0.0
  %121 = vmatpush2.msra.mxu0 0.0
  %122 = vmatprep.subr.mxu0 0.0
  %123 = vmatpush2.msra.mxu0 0.0
  %124 = vmatprep.subr.mxu0 0.0
  %125 = vmatpush2.msra.mxu0 0.0
  %126 = vmatprep.subr.mxu0 0.0
  %127 = vmatpush2.msra.mxu0 0.0
  %128 = vmatprep.subr.mxu0 0.0
  %129 = vmatpush2.msra.mxu0 0.0
  %130 = vmatprep.subr.mxu0 0.0
  %131 = vmatpush2.msra.mxu0 0.0
  %132 = vmatprep.subr.mxu0 0.0
  %133 = vmatpush2.msra.mxu0 0.0
  %134 = vmatprep.subr.mxu0 0.0
  %135 = vmatpush2.msra.mxu0 0.0
  %136 = vmatprep.subr.mxu0 0.0
  %137 = vmatpush2.msra.mxu0 0.0
  %138 = vmatprep.subr.mxu0 0.0
  %139 = vmatpush2.msra.mxu0 0.0
  %140 = vmatprep.subr.mxu0 0.0
  %141 = vmatpush2.msra.mxu0 0.0
  %142 = vmatprep.mubr.f32.mxu0 0.0
  %143 = vmatmul.mubr.f32.gmra.mxu0 %v63
  %v144 = vpop.f32.mrf.mxu0
  %v145 = vadd.f32 0.0, %v144
  %v146 = vpop.f32.mrf.mxu0
  %147 = vmatprep.mubr.f32.mxu0 0.0
  %148 = vmatmul.mubr.f32.gmra.mxu0 %v66
  %v149 = vpop.f32.mrf.mxu0
  %v150 = vadd.f32 0.0, %v149
  %v151 = vpop.f32.mrf.mxu0
  %152 = vmatprep.mubr.f32.mxu0 0.0
  %153 = vmatmul.mubr.f32.gmra.mxu0 %v69
  %v154 = vpop.f32.mrf.mxu0
  %v155 = vadd.f32 0.0, %v154
  %v156 = vpop.f32.mrf.mxu0
  %157 = vmatprep.mubr.f32.mxu0 0.0
  %158 = vmatmul.mubr.f32.gmra.mxu0 %v72
  %v159 = vpop.f32.mrf.mxu0
  %v160 = vadd.f32 0.0, %v159
  %v161 = vpop.f32.mrf.mxu0
  %162 = vdwg.mxu0
  %v164 = vsel %vm46, %v51, 0
  %v167 = vsel %vm46, %v52, 0
  %v170 = vsel %vm46, %v53, 0
  %v173 = vsel %vm46, %v54, 0
  %v176 = vsel %vm74, %v55, 0
  %178 = vmatprep.subr.mxu0 0.0
  %179 = vmatpush1.msra.mxu0 0.0
  %180 = vmatprep.subr.mxu0 0.0
  %181 = vmatpush1.msra.mxu0 0.0
  %182 = vmatprep.subr.mxu0 0.0
  %183 = vmatpush1.msra.mxu0 0.0
  %184 = vmatprep.subr.mxu0 0.0
  %185 = vmatpush1.msra.mxu0 0.0
  %186 = vmatprep.subr.mxu0 0.0
  %187 = vmatpush1.msra.mxu0 0.0
  %188 = vmatprep.subr.mxu0 0.0
  %189 = vmatpush1.msra.mxu0 0.0
  %190 = vmatprep.subr.mxu0 0.0
  %191 = vmatpush1.msra.mxu0 0.0
  %192 = vmatprep.subr.mxu0 0.0
  %193 = vmatpush1.msra.mxu0 0.0
  %194 = vmatprep.subr.mxu0 0.0
  %195 = vmatpush1.msra.mxu0 0.0
  %196 = vmatprep.subr.mxu0 0.0
  %197 = vmatpush1.msra.mxu0 0.0
  %198 = vmatprep.subr.mxu0 0.0
  %199 = vmatpush1.msra.mxu0 0.0
  %200 = vmatprep.subr.mxu0 0.0
  %201 = vmatpush1.msra.mxu0 0.0
  %202 = vmatprep.subr.mxu0 0.0
  %203 = vmatpush1.msra.mxu0 0.0
  %204 = vmatprep.subr.mxu0 0.0
  %205 = vmatpush1.msra.mxu0 0.0
  %206 = vmatprep.subr.mxu0 0.0
  %207 = vmatpush1.msra.mxu0 0.0
  %208 = vmatprep.subr.mxu0 0.0
  %209 = vmatpush1.msra.mxu0 %v176
  %210 = vmatprep.subr.mxu0 0.0
  %211 = vmatpush2.msra.mxu0 0.0
  %212 = vmatprep.subr.mxu0 0.0
  %213 = vmatpush2.msra.mxu0 0.0
  %214 = vmatprep.subr.mxu0 0.0
  %215 = vmatpush2.msra.mxu0 0.0
  %216 = vmatprep.subr.mxu0 0.0
  %217 = vmatpush2.msra.mxu0 0.0
  %218 = vmatprep.subr.mxu0 0.0
  %219 = vmatpush2.msra.mxu0 0.0
  %220 = vmatprep.subr.mxu0 0.0
  %221 = vmatpush2.msra.mxu0 0.0
  %222 = vmatprep.subr.mxu0 0.0
  %223 = vmatpush2.msra.mxu0 0.0
  %224 = vmatprep.subr.mxu0 0.0
  %225 = vmatpush2.msra.mxu0 0.0
  %226 = vmatprep.subr.mxu0 0.0
  %227 = vmatpush2.msra.mxu0 0.0
  %228 = vmatprep.subr.mxu0 0.0
  %229 = vmatpush2.msra.mxu0 0.0
  %230 = vmatprep.subr.mxu0 0.0
  %231 = vmatpush2.msra.mxu0 0.0
  %232 = vmatprep.subr.mxu0 0.0
  %233 = vmatpush2.msra.mxu0 0.0
  %234 = vmatprep.subr.mxu0 0.0
  %235 = vmatpush2.msra.mxu0 0.0
  %236 = vmatprep.subr.mxu0 0.0
  %237 = vmatpush2.msra.mxu0 0.0
  %238 = vmatprep.subr.mxu0 0.0
  %239 = vmatpush2.msra.mxu0 0.0
  %240 = vmatprep.subr.mxu0 0.0
  %241 = vmatpush2.msra.mxu0 0.0
  %242 = vmatprep.mubr.f32.mxu0 0.0
  %243 = vmatmul.mubr.f32.gmra.mxu0 %v164
  %v244 = vpop.f32.mrf.mxu0
  %v245 = vadd.f32 %v145, %v244
  %v246 = vpop.f32.mrf.mxu0
  %247 = vmatprep.mubr.f32.mxu0 0.0
  %248 = vmatmul.mubr.f32.gmra.mxu0 %v167
  %v249 = vpop.f32.mrf.mxu0
  %v250 = vadd.f32 %v150, %v249
  %v251 = vpop.f32.mrf.mxu0
  %252 = vmatprep.mubr.f32.mxu0 0.0
  %253 = vmatmul.mubr.f32.gmra.mxu0 %v170
  %v254 = vpop.f32.mrf.mxu0
  %v255 = vadd.f32 %v155, %v254
  %v256 = vpop.f32.mrf.mxu0
  %257 = vmatprep.mubr.f32.mxu0 0.0
  %258 = vmatmul.mubr.f32.gmra.mxu0 %v173
  %v259 = vpop.f32.mrf.mxu0
  %v260 = vadd.f32 %v160, %v259
  %v261 = vpop.f32.mrf.mxu0
  %262 = vdwg.mxu0
  %v263 = vld [vmem:[#allocation2 + $0x8] sm:$0xff]
  %v264 = vld [vmem:[#allocation2 + $0x10] sm:$0xff]
  %v265 = vld [vmem:[#allocation2 + $0x28] sm:$0xff]
  %v266 = vld [vmem:[#allocation2 + $0x30] sm:$0xff]
  %s267 = scalar_lea.vmem %s1, 8
  %v268 = vld [vmem:[%s267] sm:$0xf]
  %v270 = vsel %vm46, %v263, 0
  %v273 = vsel %vm46, %v264, 0
  %v276 = vsel %vm46, %v265, 0
  %v279 = vsel %vm46, %v266, 0
  %v282 = vsel %vm74, %v268, 0
  %284 = vmatprep.subr.mxu0 0.0
  %285 = vmatpush1.msra.mxu0 0.0
  %286 = vmatprep.subr.mxu0 0.0
  %287 = vmatpush1.msra.mxu0 0.0
  %288 = vmatprep.subr.mxu0 0.0
  %289 = vmatpush1.msra.mxu0 0.0
  %290 = vmatprep.subr.mxu0 0.0
  %291 = vmatpush1.msra.mxu0 0.0
  %292 = vmatprep.subr.mxu0 0.0
  %293 = vmatpush1.msra.mxu0 0.0
  %294 = vmatprep.subr.mxu0 0.0
  %295 = vmatpush1.msra.mxu0 0.0
  %296 = vmatprep.subr.mxu0 0.0
  %297 = vmatpush1.msra.mxu0 0.0
  %298 = vmatprep.subr.mxu0 0.0
  %299 = vmatpush1.msra.mxu0 0.0
  %300 = vmatprep.subr.mxu0 0.0
  %301 = vmatpush1.msra.mxu0 0.0
  %302 = vmatprep.subr.mxu0 0.0
  %303 = vmatpush1.msra.mxu0 0.0
  %304 = vmatprep.subr.mxu0 0.0
  %305 = vmatpush1.msra.mxu0 0.0
  %306 = vmatprep.subr.mxu0 0.0
  %307 = vmatpush1.msra.mxu0 0.0
  %308 = vmatprep.subr.mxu0 0.0
  %309 = vmatpush1.msra.mxu0 0.0
  %310 = vmatprep.subr.mxu0 0.0
  %311 = vmatpush1.msra.mxu0 0.0
  %312 = vmatprep.subr.mxu0 0.0
  %313 = vmatpush1.msra.mxu0 0.0
  %314 = vmatprep.subr.mxu0 0.0
  %315 = vmatpush1.msra.mxu0 %v282
  %316 = vmatprep.subr.mxu0 0.0
  %317 = vmatpush2.msra.mxu0 0.0
  %318 = vmatprep.subr.mxu0 0.0
  %319 = vmatpush2.msra.mxu0 0.0
  %320 = vmatprep.subr.mxu0 0.0
  %321 = vmatpush2.msra.mxu0 0.0
  %322 = vmatprep.subr.mxu0 0.0
  %323 = vmatpush2.msra.mxu0 0.0
  %324 = vmatprep.subr.mxu0 0.0
  %325 = vmatpush2.msra.mxu0 0.0
  %326 = vmatprep.subr.mxu0 0.0
  %327 = vmatpush2.msra.mxu0 0.0
  %328 = vmatprep.subr.mxu0 0.0
  %329 = vmatpush2.msra.mxu0 0.0
  %330 = vmatprep.subr.mxu0 0.0
  %331 = vmatpush2.msra.mxu0 0.0
  %332 = vmatprep.subr.mxu0 0.0
  %333 = vmatpush2.msra.mxu0 0.0
  %334 = vmatprep.subr.mxu0 0.0
  %335 = vmatpush2.msra.mxu0 0.0
  %336 = vmatprep.subr.mxu0 0.0
  %337 = vmatpush2.msra.mxu0 0.0
  %338 = vmatprep.subr.mxu0 0.0
  %339 = vmatpush2.msra.mxu0 0.0
  %340 = vmatprep.subr.mxu0 0.0
  %341 = vmatpush2.msra.mxu0 0.0
  %342 = vmatprep.subr.mxu0 0.0
  %343 = vmatpush2.msra.mxu0 0.0
  %344 = vmatprep.subr.mxu0 0.0
  %345 = vmatpush2.msra.mxu0 0.0
  %346 = vmatprep.subr.mxu0 0.0
  %347 = vmatpush2.msra.mxu0 0.0
  %348 = vmatprep.mubr.f32.mxu0 0.0
  %349 = vmatmul.mubr.f32.gmra.mxu0 %v270
  %v350 = vpop.f32.mrf.mxu0
  %v351 = vadd.f32 0.0, %v350
  %v352 = vpop.f32.mrf.mxu0
  %353 = vmatprep.mubr.f32.mxu0 0.0
  %354 = vmatmul.mubr.f32.gmra.mxu0 %v273
  %v355 = vpop.f32.mrf.mxu0
  %v356 = vadd.f32 0.0, %v355
  %v357 = vpop.f32.mrf.mxu0
  %358 = vmatprep.mubr.f32.mxu0 0.0
  %359 = vmatmul.mubr.f32.gmra.mxu0 %v276
  %v360 = vpop.f32.mrf.mxu0
  %v361 = vadd.f32 0.0, %v360
  %v362 = vpop.f32.mrf.mxu0
  %363 = vmatprep.mubr.f32.mxu0 0.0
  %364 = vmatmul.mubr.f32.gmra.mxu0 %v279
  %v365 = vpop.f32.mrf.mxu0
  %v366 = vadd.f32 0.0, %v365
  %v367 = vpop.f32.mrf.mxu0
  %368 = vdwg.mxu0
  %v369 = vadd.f32 %v245, %v351
  %v370 = vadd.f32 %v250, %v356
  %v371 = vadd.f32 %v255, %v361
  %v372 = vadd.f32 %v260, %v366
  %v373 = vld [vmem:[#allocation2 + $0x9] sm:$0xff]
  %v374 = vld [vmem:[#allocation2 + $0x11] sm:$0xff]
  %v375 = vld [vmem:[#allocation2 + $0x29] sm:$0xff]
  %v376 = vld [vmem:[#allocation2 + $0x31] sm:$0xff]
  %s377 = scalar_lea.vmem %s1, 12
  %v378 = vld [vmem:[%s377] sm:$0xf]
  %v380 = vsel %vm46, %v373, 0
  %v383 = vsel %vm46, %v374, 0
  %v386 = vsel %vm46, %v375, 0
  %v389 = vsel %vm46, %v376, 0
  %v392 = vsel %vm74, %v378, 0
  %394 = vmatprep.subr.mxu0 0.0
  %395 = vmatpush1.msra.mxu0 0.0
  %396 = vmatprep.subr.mxu0 0.0
  %397 = vmatpush1.msra.mxu0 0.0
  %398 = vmatprep.subr.mxu0 0.0
  %399 = vmatpush1.msra.mxu0 0.0
  %400 = vmatprep.subr.mxu0 0.0
  %401 = vmatpush1.msra.mxu0 0.0
  %402 = vmatprep.subr.mxu0 0.0
  %403 = vmatpush1.msra.mxu0 0.0
  %404 = vmatprep.subr.mxu0 0.0
  %405 = vmatpush1.msra.mxu0 0.0
  %406 = vmatprep.subr.mxu0 0.0
  %407 = vmatpush1.msra.mxu0 0.0
  %408 = vmatprep.subr.mxu0 0.0
  %409 = vmatpush1.msra.mxu0 0.0
  %410 = vmatprep.subr.mxu0 0.0
  %411 = vmatpush1.msra.mxu0 0.0
  %412 = vmatprep.subr.mxu0 0.0
  %413 = vmatpush1.msra.mxu0 0.0
  %414 = vmatprep.subr.mxu0 0.0
  %415 = vmatpush1.msra.mxu0 0.0
  %416 = vmatprep.subr.mxu0 0.0
  %417 = vmatpush1.msra.mxu0 0.0
  %418 = vmatprep.subr.mxu0 0.0
  %419 = vmatpush1.msra.mxu0 0.0
  %420 = vmatprep.subr.mxu0 0.0
  %421 = vmatpush1.msra.mxu0 0.0
  %422 = vmatprep.subr.mxu0 0.0
  %423 = vmatpush1.msra.mxu0 0.0
  %424 = vmatprep.subr.mxu0 0.0
  %425 = vmatpush1.msra.mxu0 %v392
  %426 = vmatprep.subr.mxu0 0.0
  %427 = vmatpush2.msra.mxu0 0.0
  %428 = vmatprep.subr.mxu0 0.0
  %429 = vmatpush2.msra.mxu0 0.0
  %430 = vmatprep.subr.mxu0 0.0
  %431 = vmatpush2.msra.mxu0 0.0
  %432 = vmatprep.subr.mxu0 0.0
  %433 = vmatpush2.msra.mxu0 0.0
  %434 = vmatprep.subr.mxu0 0.0
  %435 = vmatpush2.msra.mxu0 0.0
  %436 = vmatprep.subr.mxu0 0.0
  %437 = vmatpush2.msra.mxu0 0.0
  %438 = vmatprep.subr.mxu0 0.0
  %439 = vmatpush2.msra.mxu0 0.0
  %440 = vmatprep.subr.mxu0 0.0
  %441 = vmatpush2.msra.mxu0 0.0
  %442 = vmatprep.subr.mxu0 0.0
  %443 = vmatpush2.msra.mxu0 0.0
  %444 = vmatprep.subr.mxu0 0.0
  %445 = vmatpush2.msra.mxu0 0.0
  %446 = vmatprep.subr.mxu0 0.0
  %447 = vmatpush2.msra.mxu0 0.0
  %448 = vmatprep.subr.mxu0 0.0
  %449 = vmatpush2.msra.mxu0 0.0
  %450 = vmatprep.subr.mxu0 0.0
  %451 = vmatpush2.msra.mxu0 0.0
  %452 = vmatprep.subr.mxu0 0.0
  %453 = vmatpush2.msra.mxu0 0.0
  %454 = vmatprep.subr.mxu0 0.0
  %455 = vmatpush2.msra.mxu0 0.0
  %456 = vmatprep.subr.mxu0 0.0
  %457 = vmatpush2.msra.mxu0 0.0
  %458 = vmatprep.mubr.f32.mxu0 0.0
  %459 = vmatmul.mubr.f32.gmra.mxu0 %v380
  %v460 = vpop.f32.mrf.mxu0
  %v461 = vadd.f32 0.0, %v460
  %v462 = vpop.f32.mrf.mxu0
  %463 = vmatprep.mubr.f32.mxu0 0.0
  %464 = vmatmul.mubr.f32.gmra.mxu0 %v383
  %v465 = vpop.f32.mrf.mxu0
  %v466 = vadd.f32 0.0, %v465
  %v467 = vpop.f32.mrf.mxu0
  %468 = vmatprep.mubr.f32.mxu0 0.0
  %469 = vmatmul.mubr.f32.gmra.mxu0 %v386
  %v470 = vpop.f32.mrf.mxu0
  %v471 = vadd.f32 0.0, %v470
  %v472 = vpop.f32.mrf.mxu0
  %473 = vmatprep.mubr.f32.mxu0 0.0
  %474 = vmatmul.mubr.f32.gmra.mxu0 %v389
  %v475 = vpop.f32.mrf.mxu0
  %v476 = vadd.f32 0.0, %v475
  %v477 = vpop.f32.mrf.mxu0
  %478 = vdwg.mxu0
  %v479 = vadd.f32 %v369, %v461
  %v480 = vadd.f32 %v370, %v466
  %v481 = vadd.f32 %v371, %v471
  %v482 = vadd.f32 %v372, %v476
  %v483 = vld [vmem:[#allocation2 + $0xa] sm:$0xff]
  %v484 = vld [vmem:[#allocation2 + $0x12] sm:$0xff]
  %v485 = vld [vmem:[#allocation2 + $0x2a] sm:$0xff]
  %v486 = vld [vmem:[#allocation2 + $0x32] sm:$0xff]
  %s487 = scalar_lea.vmem %s1, 16
  %v488 = vld [vmem:[%s487] sm:$0xf]
  %v490 = vsel %vm46, %v483, 0
  %v493 = vsel %vm46, %v484, 0
  %v496 = vsel %vm46, %v485, 0
  %v499 = vsel %vm46, %v486, 0
  %v502 = vsel %vm74, %v488, 0
  %504 = vmatprep.subr.mxu0 0.0
  %505 = vmatpush1.msra.mxu0 0.0
  %506 = vmatprep.subr.mxu0 0.0
  %507 = vmatpush1.msra.mxu0 0.0
  %508 = vmatprep.subr.mxu0 0.0
  %509 = vmatpush1.msra.mxu0 0.0
  %510 = vmatprep.subr.mxu0 0.0
  %511 = vmatpush1.msra.mxu0 0.0
  %512 = vmatprep.subr.mxu0 0.0
  %513 = vmatpush1.msra.mxu0 0.0
  %514 = vmatprep.subr.mxu0 0.0
  %515 = vmatpush1.msra.mxu0 0.0
  %516 = vmatprep.subr.mxu0 0.0
  %517 = vmatpush1.msra.mxu0 0.0
  %518 = vmatprep.subr.mxu0 0.0
  %519 = vmatpush1.msra.mxu0 0.0
  %520 = vmatprep.subr.mxu0 0.0
  %521 = vmatpush1.msra.mxu0 0.0
  %522 = vmatprep.subr.mxu0 0.0
  %523 = vmatpush1.msra.mxu0 0.0
  %524 = vmatprep.subr.mxu0 0.0
  %525 = vmatpush1.msra.mxu0 0.0
  %526 = vmatprep.subr.mxu0 0.0
  %527 = vmatpush1.msra.mxu0 0.0
  %528 = vmatprep.subr.mxu0 0.0
  %529 = vmatpush1.msra.mxu0 0.0
  %530 = vmatprep.subr.mxu0 0.0
  %531 = vmatpush1.msra.mxu0 0.0
  %532 = vmatprep.subr.mxu0 0.0
  %533 = vmatpush1.msra.mxu0 0.0
  %534 = vmatprep.subr.mxu0 0.0
  %535 = vmatpush1.msra.mxu0 %v502
  %536 = vmatprep.subr.mxu0 0.0
  %537 = vmatpush2.msra.mxu0 0.0
  %538 = vmatprep.subr.mxu0 0.0
  %539 = vmatpush2.msra.mxu0 0.0
  %540 = vmatprep.subr.mxu0 0.0
  %541 = vmatpush2.msra.mxu0 0.0
  %542 = vmatprep.subr.mxu0 0.0
  %543 = vmatpush2.msra.mxu0 0.0
  %544 = vmatprep.subr.mxu0 0.0
  %545 = vmatpush2.msra.mxu0 0.0
  %546 = vmatprep.subr.mxu0 0.0
  %547 = vmatpush2.msra.mxu0 0.0
  %548 = vmatprep.subr.mxu0 0.0
  %549 = vmatpush2.msra.mxu0 0.0
  %550 = vmatprep.subr.mxu0 0.0
  %551 = vmatpush2.msra.mxu0 0.0
  %552 = vmatprep.subr.mxu0 0.0
  %553 = vmatpush2.msra.mxu0 0.0
  %554 = vmatprep.subr.mxu0 0.0
  %555 = vmatpush2.msra.mxu0 0.0
  %556 = vmatprep.subr.mxu0 0.0
  %557 = vmatpush2.msra.mxu0 0.0
  %558 = vmatprep.subr.mxu0 0.0
  %559 = vmatpush2.msra.mxu0 0.0
  %560 = vmatprep.subr.mxu0 0.0
  %561 = vmatpush2.msra.mxu0 0.0
  %562 = vmatprep.subr.mxu0 0.0
  %563 = vmatpush2.msra.mxu0 0.0
  %564 = vmatprep.subr.mxu0 0.0
  %565 = vmatpush2.msra.mxu0 0.0
  %566 = vmatprep.subr.mxu0 0.0
  %567 = vmatpush2.msra.mxu0 0.0
  %568 = vmatprep.mubr.f32.mxu0 0.0
  %569 = vmatmul.mubr.f32.gmra.mxu0 %v490
  %v570 = vpop.f32.mrf.mxu0
  %v571 = vadd.f32 0.0, %v570
  %v572 = vpop.f32.mrf.mxu0
  %573 = vmatprep.mubr.f32.mxu0 0.0
  %574 = vmatmul.mubr.f32.gmra.mxu0 %v493
  %v575 = vpop.f32.mrf.mxu0
  %v576 = vadd.f32 0.0, %v575
  %v577 = vpop.f32.mrf.mxu0
  %578 = vmatprep.mubr.f32.mxu0 0.0
  %579 = vmatmul.mubr.f32.gmra.mxu0 %v496
  %v580 = vpop.f32.mrf.mxu0
  %v581 = vadd.f32 0.0, %v580
  %v582 = vpop.f32.mrf.mxu0
  %583 = vmatprep.mubr.f32.mxu0 0.0
  %584 = vmatmul.mubr.f32.gmra.mxu0 %v499
  %v585 = vpop.f32.mrf.mxu0
  %v586 = vadd.f32 0.0, %v585
  %v587 = vpop.f32.mrf.mxu0
  %588 = vdwg.mxu0
  %v589 = vadd.f32 %v479, %v571
  %v590 = vadd.f32 %v480, %v576
  %v591 = vadd.f32 %v481, %v581
  %v592 = vadd.f32 %v482, %v586
  %v593 = vld [vmem:[%s2] sm:$0x1]
  %v595 = vlaneseq
  %v596 = vshrl.u32 %v595, 7
  %v597 = vsub.s32 0, %v596
  %v598 = vrot.slane %v593, %v597
  %v600 = vadd.f32 %v589, %v598
  %v601 = vadd.f32 %v590, %v598
  %v602 = vadd.f32 %v591, %v598
  %v603 = vadd.f32 %v592, %v598
  %vm604 = vcmp.gt.f32.partialorder %v600, 0.0
  %vm605 = vcmp.gt.f32.partialorder %v601, 0.0
  %vm606 = vcmp.gt.f32.partialorder %v602, 0.0
  %vm607 = vcmp.gt.f32.partialorder %v603, 0.0
  %v608 = vmul.f32 %v600, 0.01
  %v609 = vmul.f32 %v601, 0.01
  %v610 = vmul.f32 %v602, 0.01
  %v611 = vmul.f32 %v603, 0.01
  %v612 = vsel %vm604, %v600, %v608
  %v613 = vsel %vm605, %v601, %v609
  %v614 = vsel %vm606, %v602, %v610
  %v615 = vsel %vm607, %v603, %v611
  %616 = vst [vmem:[#allocation2 + $0x8] sm:$0xff] %v612
  %617 = vst [vmem:[#allocation2 + $0x10] sm:$0xff] %v613
  %618 = vst [vmem:[#allocation2 + $0x28] sm:$0xff] %v614
  %619 = vst [vmem:[#allocation2 + $0x30] sm:$0xff] %v615
  %v620 = vld [vmem:[#allocation2 + $0x6] sm:$0xff]
  %v621 = vld [vmem:[#allocation2 + $0xe] sm:$0xff]
  %v622 = vld [vmem:[#allocation2 + $0x26] sm:$0xff]
  %v623 = vld [vmem:[#allocation2 + $0x2e] sm:$0xff]
  %v624 = vld [vmem:[%s3] sm:$0xff]
  %v625 = vld [vmem:[%s3 + $0x8] sm:$0xff]
  %v626 = vld [vmem:[%s3 + $0x10] sm:$0xff]
  %v627 = vld [vmem:[%s3 + $0x18] sm:$0xff]
  %v628 = vld [vmem:[%s3 + $0x20] sm:$0xff]
  %v629 = vld [vmem:[%s3 + $0x28] sm:$0xff]
  %v630 = vld [vmem:[%s3 + $0x30] sm:$0xff]
  %v631 = vld [vmem:[%s3 + $0x38] sm:$0xff]
  %v632 = vld [vmem:[%s3 + $0x40] sm:$0xff]
  %v633 = vld [vmem:[%s3 + $0x48] sm:$0xff]
  %v634 = vld [vmem:[%s3 + $0x50] sm:$0xff]
  %v635 = vld [vmem:[%s3 + $0x58] sm:$0xff]
  %v636 = vld [vmem:[%s3 + $0x60] sm:$0xff]
  %v637 = vld [vmem:[%s3 + $0x68] sm:$0xff]
  %v638 = vld [vmem:[%s3 + $0x70] sm:$0xff]
  %v639 = vld [vmem:[%s3 + $0x78] sm:$0xff]
  %v640 = vld [vmem:[#allocation2 + $0x7] sm:$0xff]
  %v641 = vld [vmem:[#allocation2 + $0xf] sm:$0xff]
  %v642 = vld [vmem:[#allocation2 + $0x27] sm:$0xff]
  %v643 = vld [vmem:[#allocation2 + $0x2f] sm:$0xff]
  %s644 = scalar_lea.vmem %s3, 128
  %v645 = vld [vmem:[%s644] sm:$0xff]
  %v646 = vld [vmem:[%s644 + $0x8] sm:$0xff]
  %v647 = vld [vmem:[%s644 + $0x10] sm:$0xff]
  %v648 = vld [vmem:[%s644 + $0x18] sm:$0xff]
  %v649 = vld [vmem:[%s644 + $0x20] sm:$0xff]
  %v650 = vld [vmem:[%s644 + $0x28] sm:$0xff]
  %v651 = vld [vmem:[%s644 + $0x30] sm:$0xff]
  %v652 = vld [vmem:[%s644 + $0x38] sm:$0xff]
  %v653 = vld [vmem:[%s644 + $0x40] sm:$0xff]
  %v654 = vld [vmem:[%s644 + $0x48] sm:$0xff]
  %v655 = vld [vmem:[%s644 + $0x50] sm:$0xff]
  %v656 = vld [vmem:[%s644 + $0x58] sm:$0xff]
  %v657 = vld [vmem:[%s644 + $0x60] sm:$0xff]
  %v658 = vld [vmem:[%s644 + $0x68] sm:$0xff]
  %v659 = vld [vmem:[%s644 + $0x70] sm:$0xff]
  %v660 = vld [vmem:[%s644 + $0x78] sm:$0xff]
  %661 = vmatprep.subr.mxu0 0.0
  %662 = vmatpush1.msra.mxu0 %v660
  %663 = vmatprep.subr.mxu0 0.0
  %664 = vmatpush1.msra.mxu0 %v659
  %665 = vmatprep.subr.mxu0 0.0
  %666 = vmatpush1.msra.mxu0 %v658
  %667 = vmatprep.subr.mxu0 0.0
  %668 = vmatpush1.msra.mxu0 %v657
  %669 = vmatprep.subr.mxu0 0.0
  %670 = vmatpush1.msra.mxu0 %v656
  %671 = vmatprep.subr.mxu0 0.0
  %672 = vmatpush1.msra.mxu0 %v655
  %673 = vmatprep.subr.mxu0 0.0
  %674 = vmatpush1.msra.mxu0 %v654
  %675 = vmatprep.subr.mxu0 0.0
  %676 = vmatpush1.msra.mxu0 %v653
  %677 = vmatprep.subr.mxu0 0.0
  %678 = vmatpush1.msra.mxu0 %v652
  %679 = vmatprep.subr.mxu0 0.0
  %680 = vmatpush1.msra.mxu0 %v651
  %681 = vmatprep.subr.mxu0 0.0
  %682 = vmatpush1.msra.mxu0 %v650
  %683 = vmatprep.subr.mxu0 0.0
  %684 = vmatpush1.msra.mxu0 %v649
  %685 = vmatprep.subr.mxu0 0.0
  %686 = vmatpush1.msra.mxu0 %v648
  %687 = vmatprep.subr.mxu0 0.0
  %688 = vmatpush1.msra.mxu0 %v647
  %689 = vmatprep.subr.mxu0 0.0
  %690 = vmatpush1.msra.mxu0 %v646
  %691 = vmatprep.subr.mxu0 0.0
  %692 = vmatpush1.msra.mxu0 %v645
  %693 = vmatprep.subr.mxu0 0.0
  %694 = vmatpush2.msra.mxu0 0.0
  %695 = vmatprep.subr.mxu0 0.0
  %696 = vmatpush2.msra.mxu0 0.0
  %697 = vmatprep.subr.mxu0 0.0
  %698 = vmatpush2.msra.mxu0 0.0
  %699 = vmatprep.subr.mxu0 0.0
  %700 = vmatpush2.msra.mxu0 0.0
  %701 = vmatprep.subr.mxu0 0.0
  %702 = vmatpush2.msra.mxu0 0.0
  %703 = vmatprep.subr.mxu0 0.0
  %704 = vmatpush2.msra.mxu0 0.0
  %705 = vmatprep.subr.mxu0 0.0
  %706 = vmatpush2.msra.mxu0 0.0
  %707 = vmatprep.subr.mxu0 0.0
  %708 = vmatpush2.msra.mxu0 0.0
  %709 = vmatprep.subr.mxu0 0.0
  %710 = vmatpush2.msra.mxu0 0.0
  %711 = vmatprep.subr.mxu0 0.0
  %712 = vmatpush2.msra.mxu0 0.0
  %713 = vmatprep.subr.mxu0 0.0
  %714 = vmatpush2.msra.mxu0 0.0
  %715 = vmatprep.subr.mxu0 0.0
  %716 = vmatpush2.msra.mxu0 0.0
  %717 = vmatprep.subr.mxu0 0.0
  %718 = vmatpush2.msra.mxu0 0.0
  %719 = vmatprep.subr.mxu0 0.0
  %720 = vmatpush2.msra.mxu0 0.0
  %721 = vmatprep.subr.mxu0 0.0
  %722 = vmatpush2.msra.mxu0 0.0
  %723 = vmatprep.subr.mxu0 0.0
  %724 = vmatpush2.msra.mxu0 0.0
  %725 = vmatprep.mubr.f32.mxu0 0.0
  %726 = vmatmul.mubr.f32.gmra.mxu0 %v640
  %v727 = vpop.f32.mrf.mxu0
  %v728 = vadd.f32 0.0, %v727
  %v729 = vpop.f32.mrf.mxu0
  %730 = vmatprep.mubr.f32.mxu0 0.0
  %731 = vmatmul.mubr.f32.gmra.mxu0 %v641
  %v732 = vpop.f32.mrf.mxu0
  %v733 = vadd.f32 0.0, %v732
  %v734 = vpop.f32.mrf.mxu0
  %735 = vmatprep.mubr.f32.mxu0 0.0
  %736 = vmatmul.mubr.f32.gmra.mxu0 %v642
  %v737 = vpop.f32.mrf.mxu0
  %v738 = vadd.f32 0.0, %v737
  %v739 = vpop.f32.mrf.mxu0
  %740 = vmatprep.mubr.f32.mxu0 0.0
  %741 = vmatmul.mubr.f32.gmra.mxu0 %v643
  %v742 = vpop.f32.mrf.mxu0
  %v743 = vadd.f32 0.0, %v742
  %v744 = vpop.f32.mrf.mxu0
  %745 = vdwg.mxu0
  %746 = vmatprep.subr.mxu0 0.0
  %747 = vmatpush1.msra.mxu0 %v639
  %748 = vmatprep.subr.mxu0 0.0
  %749 = vmatpush1.msra.mxu0 %v638
  %750 = vmatprep.subr.mxu0 0.0
  %751 = vmatpush1.msra.mxu0 %v637
  %752 = vmatprep.subr.mxu0 0.0
  %753 = vmatpush1.msra.mxu0 %v636
  %754 = vmatprep.subr.mxu0 0.0
  %755 = vmatpush1.msra.mxu0 %v635
  %756 = vmatprep.subr.mxu0 0.0
  %757 = vmatpush1.msra.mxu0 %v634
  %758 = vmatprep.subr.mxu0 0.0
  %759 = vmatpush1.msra.mxu0 %v633
  %760 = vmatprep.subr.mxu0 0.0
  %761 = vmatpush1.msra.mxu0 %v632
  %762 = vmatprep.subr.mxu0 0.0
  %763 = vmatpush1.msra.mxu0 %v631
  %764 = vmatprep.subr.mxu0 0.0
  %765 = vmatpush1.msra.mxu0 %v630
  %766 = vmatprep.subr.mxu0 0.0
  %767 = vmatpush1.msra.mxu0 %v629
  %768 = vmatprep.subr.mxu0 0.0
  %769 = vmatpush1.msra.mxu0 %v628
  %770 = vmatprep.subr.mxu0 0.0
  %771 = vmatpush1.msra.mxu0 %v627
  %772 = vmatprep.subr.mxu0 0.0
  %773 = vmatpush1.msra.mxu0 %v626
  %774 = vmatprep.subr.mxu0 0.0
  %775 = vmatpush1.msra.mxu0 %v625
  %776 = vmatprep.subr.mxu0 0.0
  %777 = vmatpush1.msra.mxu0 %v624
  %778 = vmatprep.subr.mxu0 0.0
  %779 = vmatpush2.msra.mxu0 0.0
  %780 = vmatprep.subr.mxu0 0.0
  %781 = vmatpush2.msra.mxu0 0.0
  %782 = vmatprep.subr.mxu0 0.0
  %783 = vmatpush2.msra.mxu0 0.0
  %784 = vmatprep.subr.mxu0 0.0
  %785 = vmatpush2.msra.mxu0 0.0
  %786 = vmatprep.subr.mxu0 0.0
  %787 = vmatpush2.msra.mxu0 0.0
  %788 = vmatprep.subr.mxu0 0.0
  %789 = vmatpush2.msra.mxu0 0.0
  %790 = vmatprep.subr.mxu0 0.0
  %791 = vmatpush2.msra.mxu0 0.0
  %792 = vmatprep.subr.mxu0 0.0
  %793 = vmatpush2.msra.mxu0 0.0
  %794 = vmatprep.subr.mxu0 0.0
  %795 = vmatpush2.msra.mxu0 0.0
  %796 = vmatprep.subr.mxu0 0.0
  %797 = vmatpush2.msra.mxu0 0.0
  %798 = vmatprep.subr.mxu0 0.0
  %799 = vmatpush2.msra.mxu0 0.0
  %800 = vmatprep.subr.mxu0 0.0
  %801 = vmatpush2.msra.mxu0 0.0
  %802 = vmatprep.subr.mxu0 0.0
  %803 = vmatpush2.msra.mxu0 0.0
  %804 = vmatprep.subr.mxu0 0.0
  %805 = vmatpush2.msra.mxu0 0.0
  %806 = vmatprep.subr.mxu0 0.0
  %807 = vmatpush2.msra.mxu0 0.0
  %808 = vmatprep.subr.mxu0 0.0
  %809 = vmatpush2.msra.mxu0 0.0
  %810 = vmatprep.mubr.f32.mxu0 0.0
  %811 = vmatmul.mubr.f32.gmra.mxu0 %v620
  %v812 = vpop.f32.mrf.mxu0
  %v813 = vadd.f32 %v728, %v812
  %v814 = vpop.f32.mrf.mxu0
  %815 = vmatprep.mubr.f32.mxu0 0.0
  %816 = vmatmul.mubr.f32.gmra.mxu0 %v621
  %v817 = vpop.f32.mrf.mxu0
  %v818 = vadd.f32 %v733, %v817
  %v819 = vpop.f32.mrf.mxu0
  %820 = vmatprep.mubr.f32.mxu0 0.0
  %821 = vmatmul.mubr.f32.gmra.mxu0 %v622
  %v822 = vpop.f32.mrf.mxu0
  %v823 = vadd.f32 %v738, %v822
  %v824 = vpop.f32.mrf.mxu0
  %825 = vmatprep.mubr.f32.mxu0 0.0
  %826 = vmatmul.mubr.f32.gmra.mxu0 %v623
  %v827 = vpop.f32.mrf.mxu0
  %v828 = vadd.f32 %v743, %v827
  %v829 = vpop.f32.mrf.mxu0
  %830 = vdwg.mxu0
  %v831 = vld [vmem:[#allocation2 + $0x8] sm:$0xff]
  %v832 = vld [vmem:[#allocation2 + $0x10] sm:$0xff]
  %v833 = vld [vmem:[#allocation2 + $0x28] sm:$0xff]
  %v834 = vld [vmem:[#allocation2 + $0x30] sm:$0xff]
  %s835 = scalar_lea.vmem %s3, 256
  %v836 = vld [vmem:[%s835] sm:$0xff]
  %v837 = vld [vmem:[%s835 + $0x8] sm:$0xff]
  %v838 = vld [vmem:[%s835 + $0x10] sm:$0xff]
  %v839 = vld [vmem:[%s835 + $0x18] sm:$0xff]
  %v840 = vld [vmem:[%s835 + $0x20] sm:$0xff]
  %v841 = vld [vmem:[%s835 + $0x28] sm:$0xff]
  %v842 = vld [vmem:[%s835 + $0x30] sm:$0xff]
  %v843 = vld [vmem:[%s835 + $0x38] sm:$0xff]
  %v844 = vld [vmem:[%s835 + $0x40] sm:$0xff]
  %v845 = vld [vmem:[%s835 + $0x48] sm:$0xff]
  %v846 = vld [vmem:[%s835 + $0x50] sm:$0xff]
  %v847 = vld [vmem:[%s835 + $0x58] sm:$0xff]
  %v848 = vld [vmem:[%s835 + $0x60] sm:$0xff]
  %v849 = vld [vmem:[%s835 + $0x68] sm:$0xff]
  %v850 = vld [vmem:[%s835 + $0x70] sm:$0xff]
  %v851 = vld [vmem:[%s835 + $0x78] sm:$0xff]
  %852 = vmatprep.subr.mxu0 0.0
  %853 = vmatpush1.msra.mxu0 %v851
  %854 = vmatprep.subr.mxu0 0.0
  %855 = vmatpush1.msra.mxu0 %v850
  %856 = vmatprep.subr.mxu0 0.0
  %857 = vmatpush1.msra.mxu0 %v849
  %858 = vmatprep.subr.mxu0 0.0
  %859 = vmatpush1.msra.mxu0 %v848
  %860 = vmatprep.subr.mxu0 0.0
  %861 = vmatpush1.msra.mxu0 %v847
  %862 = vmatprep.subr.mxu0 0.0
  %863 = vmatpush1.msra.mxu0 %v846
  %864 = vmatprep.subr.mxu0 0.0
  %865 = vmatpush1.msra.mxu0 %v845
  %866 = vmatprep.subr.mxu0 0.0
  %867 = vmatpush1.msra.mxu0 %v844
  %868 = vmatprep.subr.mxu0 0.0
  %869 = vmatpush1.msra.mxu0 %v843
  %870 = vmatprep.subr.mxu0 0.0
  %871 = vmatpush1.msra.mxu0 %v842
  %872 = vmatprep.subr.mxu0 0.0
  %873 = vmatpush1.msra.mxu0 %v841
  %874 = vmatprep.subr.mxu0 0.0
  %875 = vmatpush1.msra.mxu0 %v840
  %876 = vmatprep.subr.mxu0 0.0
  %877 = vmatpush1.msra.mxu0 %v839
  %878 = vmatprep.subr.mxu0 0.0
  %879 = vmatpush1.msra.mxu0 %v838
  %880 = vmatprep.subr.mxu0 0.0
  %881 = vmatpush1.msra.mxu0 %v837
  %882 = vmatprep.subr.mxu0 0.0
  %883 = vmatpush1.msra.mxu0 %v836
  %884 = vmatprep.subr.mxu0 0.0
  %885 = vmatpush2.msra.mxu0 0.0
  %886 = vmatprep.subr.mxu0 0.0
  %887 = vmatpush2.msra.mxu0 0.0
  %888 = vmatprep.subr.mxu0 0.0
  %889 = vmatpush2.msra.mxu0 0.0
  %890 = vmatprep.subr.mxu0 0.0
  %891 = vmatpush2.msra.mxu0 0.0
  %892 = vmatprep.subr.mxu0 0.0
  %893 = vmatpush2.msra.mxu0 0.0
  %894 = vmatprep.subr.mxu0 0.0
  %895 = vmatpush2.msra.mxu0 0.0
  %896 = vmatprep.subr.mxu0 0.0
  %897 = vmatpush2.msra.mxu0 0.0
  %898 = vmatprep.subr.mxu0 0.0
  %899 = vmatpush2.msra.mxu0 0.0
  %900 = vmatprep.subr.mxu0 0.0
  %901 = vmatpush2.msra.mxu0 0.0
  %902 = vmatprep.subr.mxu0 0.0
  %903 = vmatpush2.msra.mxu0 0.0
  %904 = vmatprep.subr.mxu0 0.0
  %905 = vmatpush2.msra.mxu0 0.0
  %906 = vmatprep.subr.mxu0 0.0
  %907 = vmatpush2.msra.mxu0 0.0
  %908 = vmatprep.subr.mxu0 0.0
  %909 = vmatpush2.msra.mxu0 0.0
  %910 = vmatprep.subr.mxu0 0.0
  %911 = vmatpush2.msra.mxu0 0.0
  %912 = vmatprep.subr.mxu0 0.0
  %913 = vmatpush2.msra.mxu0 0.0
  %914 = vmatprep.subr.mxu0 0.0
  %915 = vmatpush2.msra.mxu0 0.0
  %916 = vmatprep.mubr.f32.mxu0 0.0
  %917 = vmatmul.mubr.f32.gmra.mxu0 %v831
  %v918 = vpop.f32.mrf.mxu0
  %v919 = vadd.f32 0.0, %v918
  %v920 = vpop.f32.mrf.mxu0
  %921 = vmatprep.mubr.f32.mxu0 0.0
  %922 = vmatmul.mubr.f32.gmra.mxu0 %v832
  %v923 = vpop.f32.mrf.mxu0
  %v924 = vadd.f32 0.0, %v923
  %v925 = vpop.f32.mrf.mxu0
  %926 = vmatprep.mubr.f32.mxu0 0.0
  %927 = vmatmul.mubr.f32.gmra.mxu0 %v833
  %v928 = vpop.f32.mrf.mxu0
  %v929 = vadd.f32 0.0, %v928
  %v930 = vpop.f32.mrf.mxu0
  %931 = vmatprep.mubr.f32.mxu0 0.0
  %932 = vmatmul.mubr.f32.gmra.mxu0 %v834
  %v933 = vpop.f32.mrf.mxu0
  %v934 = vadd.f32 0.0, %v933
  %v935 = vpop.f32.mrf.mxu0
  %936 = vdwg.mxu0
  %v937 = vadd.f32 %v813, %v919
  %v938 = vadd.f32 %v818, %v924
  %v939 = vadd.f32 %v823, %v929
  %v940 = vadd.f32 %v828, %v934
  %v941 = vld [vmem:[#allocation2 + $0x9] sm:$0xff]
  %v942 = vld [vmem:[#allocation2 + $0x11] sm:$0xff]
  %v943 = vld [vmem:[#allocation2 + $0x29] sm:$0xff]
  %v944 = vld [vmem:[#allocation2 + $0x31] sm:$0xff]
  %s945 = scalar_lea.vmem %s3, 384
  %v946 = vld [vmem:[%s945] sm:$0xff]
  %v947 = vld [vmem:[%s945 + $0x8] sm:$0xff]
  %v948 = vld [vmem:[%s945 + $0x10] sm:$0xff]
  %v949 = vld [vmem:[%s945 + $0x18] sm:$0xff]
  %v950 = vld [vmem:[%s945 + $0x20] sm:$0xff]
  %v951 = vld [vmem:[%s945 + $0x28] sm:$0xff]
  %v952 = vld [vmem:[%s945 + $0x30] sm:$0xff]
  %v953 = vld [vmem:[%s945 + $0x38] sm:$0xff]
  %v954 = vld [vmem:[%s945 + $0x40] sm:$0xff]
  %v955 = vld [vmem:[%s945 + $0x48] sm:$0xff]
  %v956 = vld [vmem:[%s945 + $0x50] sm:$0xff]
  %v957 = vld [vmem:[%s945 + $0x58] sm:$0xff]
  %v958 = vld [vmem:[%s945 + $0x60] sm:$0xff]
  %v959 = vld [vmem:[%s945 + $0x68] sm:$0xff]
  %v960 = vld [vmem:[%s945 + $0x70] sm:$0xff]
  %v961 = vld [vmem:[%s945 + $0x78] sm:$0xff]
  %962 = vmatprep.subr.mxu0 0.0
  %963 = vmatpush1.msra.mxu0 %v961
  %964 = vmatprep.subr.mxu0 0.0
  %965 = vmatpush1.msra.mxu0 %v960
  %966 = vmatprep.subr.mxu0 0.0
  %967 = vmatpush1.msra.mxu0 %v959
  %968 = vmatprep.subr.mxu0 0.0
  %969 = vmatpush1.msra.mxu0 %v958
  %970 = vmatprep.subr.mxu0 0.0
  %971 = vmatpush1.msra.mxu0 %v957
  %972 = vmatprep.subr.mxu0 0.0
  %973 = vmatpush1.msra.mxu0 %v956
  %974 = vmatprep.subr.mxu0 0.0
  %975 = vmatpush1.msra.mxu0 %v955
  %976 = vmatprep.subr.mxu0 0.0
  %977 = vmatpush1.msra.mxu0 %v954
  %978 = vmatprep.subr.mxu0 0.0
  %979 = vmatpush1.msra.mxu0 %v953
  %980 = vmatprep.subr.mxu0 0.0
  %981 = vmatpush1.msra.mxu0 %v952
  %982 = vmatprep.subr.mxu0 0.0
  %983 = vmatpush1.msra.mxu0 %v951
  %984 = vmatprep.subr.mxu0 0.0
  %985 = vmatpush1.msra.mxu0 %v950
  %986 = vmatprep.subr.mxu0 0.0
  %987 = vmatpush1.msra.mxu0 %v949
  %988 = vmatprep.subr.mxu0 0.0
  %989 = vmatpush1.msra.mxu0 %v948
  %990 = vmatprep.subr.mxu0 0.0
  %991 = vmatpush1.msra.mxu0 %v947
  %992 = vmatprep.subr.mxu0 0.0
  %993 = vmatpush1.msra.mxu0 %v946
  %994 = vmatprep.subr.mxu0 0.0
  %995 = vmatpush2.msra.mxu0 0.0
  %996 = vmatprep.subr.mxu0 0.0
  %997 = vmatpush2.msra.mxu0 0.0
  %998 = vmatprep.subr.mxu0 0.0
  %999 = vmatpush2.msra.mxu0 0.0
  %1000 = vmatprep.subr.mxu0 0.0
  %1001 = vmatpush2.msra.mxu0 0.0
  %1002 = vmatprep.subr.mxu0 0.0
  %1003 = vmatpush2.msra.mxu0 0.0
  %1004 = vmatprep.subr.mxu0 0.0
  %1005 = vmatpush2.msra.mxu0 0.0
  %1006 = vmatprep.subr.mxu0 0.0
  %1007 = vmatpush2.msra.mxu0 0.0
  %1008 = vmatprep.subr.mxu0 0.0
  %1009 = vmatpush2.msra.mxu0 0.0
  %1010 = vmatprep.subr.mxu0 0.0
  %1011 = vmatpush2.msra.mxu0 0.0
  %1012 = vmatprep.subr.mxu0 0.0
  %1013 = vmatpush2.msra.mxu0 0.0
  %1014 = vmatprep.subr.mxu0 0.0
  %1015 = vmatpush2.msra.mxu0 0.0
  %1016 = vmatprep.subr.mxu0 0.0
  %1017 = vmatpush2.msra.mxu0 0.0
  %1018 = vmatprep.subr.mxu0 0.0
  %1019 = vmatpush2.msra.mxu0 0.0
  %1020 = vmatprep.subr.mxu0 0.0
  %1021 = vmatpush2.msra.mxu0 0.0
  %1022 = vmatprep.subr.mxu0 0.0
  %1023 = vmatpush2.msra.mxu0 0.0
  %1024 = vmatprep.subr.mxu0 0.0
  %1025 = vmatpush2.msra.mxu0 0.0
  %1026 = vmatprep.mubr.f32.mxu0 0.0
  %1027 = vmatmul.mubr.f32.gmra.mxu0 %v941
  %v1028 = vpop.f32.mrf.mxu0
  %v1029 = vadd.f32 0.0, %v1028
  %v1030 = vpop.f32.mrf.mxu0
  %1031 = vmatprep.mubr.f32.mxu0 0.0
  %1032 = vmatmul.mubr.f32.gmra.mxu0 %v942
  %v1033 = vpop.f32.mrf.mxu0
  %v1034 = vadd.f32 0.0, %v1033
  %v1035 = vpop.f32.mrf.mxu0
  %1036 = vmatprep.mubr.f32.mxu0 0.0
  %1037 = vmatmul.mubr.f32.gmra.mxu0 %v943
  %v1038 = vpop.f32.mrf.mxu0
  %v1039 = vadd.f32 0.0, %v1038
  %v1040 = vpop.f32.mrf.mxu0
  %1041 = vmatprep.mubr.f32.mxu0 0.0
  %1042 = vmatmul.mubr.f32.gmra.mxu0 %v944
  %v1043 = vpop.f32.mrf.mxu0
  %v1044 = vadd.f32 0.0, %v1043
  %v1045 = vpop.f32.mrf.mxu0
  %1046 = vdwg.mxu0
  %v1047 = vadd.f32 %v937, %v1029
  %v1048 = vadd.f32 %v938, %v1034
  %v1049 = vadd.f32 %v939, %v1039
  %v1050 = vadd.f32 %v940, %v1044
  %v1051 = vld [vmem:[#allocation2 + $0xa] sm:$0xff]
  %v1052 = vld [vmem:[#allocation2 + $0x12] sm:$0xff]
  %v1053 = vld [vmem:[#allocation2 + $0x2a] sm:$0xff]
  %v1054 = vld [vmem:[#allocation2 + $0x32] sm:$0xff]
  %s1055 = scalar_lea.vmem %s3, 512
  %v1056 = vld [vmem:[%s1055] sm:$0xff]
  %v1057 = vld [vmem:[%s1055 + $0x8] sm:$0xff]
  %v1058 = vld [vmem:[%s1055 + $0x10] sm:$0xff]
  %v1059 = vld [vmem:[%s1055 + $0x18] sm:$0xff]
  %v1060 = vld [vmem:[%s1055 + $0x20] sm:$0xff]
  %v1061 = vld [vmem:[%s1055 + $0x28] sm:$0xff]
  %v1062 = vld [vmem:[%s1055 + $0x30] sm:$0xff]
  %v1063 = vld [vmem:[%s1055 + $0x38] sm:$0xff]
  %v1064 = vld [vmem:[%s1055 + $0x40] sm:$0xff]
  %v1065 = vld [vmem:[%s1055 + $0x48] sm:$0xff]
  %v1066 = vld [vmem:[%s1055 + $0x50] sm:$0xff]
  %v1067 = vld [vmem:[%s1055 + $0x58] sm:$0xff]
  %v1068 = vld [vmem:[%s1055 + $0x60] sm:$0xff]
  %v1069 = vld [vmem:[%s1055 + $0x68] sm:$0xff]
  %v1070 = vld [vmem:[%s1055 + $0x70] sm:$0xff]
  %v1071 = vld [vmem:[%s1055 + $0x78] sm:$0xff]
  %1072 = vmatprep.subr.mxu0 0.0
  %1073 = vmatpush1.msra.mxu0 %v1071
  %1074 = vmatprep.subr.mxu0 0.0
  %1075 = vmatpush1.msra.mxu0 %v1070
  %1076 = vmatprep.subr.mxu0 0.0
  %1077 = vmatpush1.msra.mxu0 %v1069
  %1078 = vmatprep.subr.mxu0 0.0
  %1079 = vmatpush1.msra.mxu0 %v1068
  %1080 = vmatprep.subr.mxu0 0.0
  %1081 = vmatpush1.msra.mxu0 %v1067
  %1082 = vmatprep.subr.mxu0 0.0
  %1083 = vmatpush1.msra.mxu0 %v1066
  %1084 = vmatprep.subr.mxu0 0.0
  %1085 = vmatpush1.msra.mxu0 %v1065
  %1086 = vmatprep.subr.mxu0 0.0
  %1087 = vmatpush1.msra.mxu0 %v1064
  %1088 = vmatprep.subr.mxu0 0.0
  %1089 = vmatpush1.msra.mxu0 %v1063
  %1090 = vmatprep.subr.mxu0 0.0
  %1091 = vmatpush1.msra.mxu0 %v1062
  %1092 = vmatprep.subr.mxu0 0.0
  %1093 = vmatpush1.msra.mxu0 %v1061
  %1094 = vmatprep.subr.mxu0 0.0
  %1095 = vmatpush1.msra.mxu0 %v1060
  %1096 = vmatprep.subr.mxu0 0.0
  %1097 = vmatpush1.msra.mxu0 %v1059
  %1098 = vmatprep.subr.mxu0 0.0
  %1099 = vmatpush1.msra.mxu0 %v1058
  %1100 = vmatprep.subr.mxu0 0.0
  %1101 = vmatpush1.msra.mxu0 %v1057
  %1102 = vmatprep.subr.mxu0 0.0
  %1103 = vmatpush1.msra.mxu0 %v1056
  %1104 = vmatprep.subr.mxu0 0.0
  %1105 = vmatpush2.msra.mxu0 0.0
  %1106 = vmatprep.subr.mxu0 0.0
  %1107 = vmatpush2.msra.mxu0 0.0
  %1108 = vmatprep.subr.mxu0 0.0
  %1109 = vmatpush2.msra.mxu0 0.0
  %1110 = vmatprep.subr.mxu0 0.0
  %1111 = vmatpush2.msra.mxu0 0.0
  %1112 = vmatprep.subr.mxu0 0.0
  %1113 = vmatpush2.msra.mxu0 0.0
  %1114 = vmatprep.subr.mxu0 0.0
  %1115 = vmatpush2.msra.mxu0 0.0
  %1116 = vmatprep.subr.mxu0 0.0
  %1117 = vmatpush2.msra.mxu0 0.0
  %1118 = vmatprep.subr.mxu0 0.0
  %1119 = vmatpush2.msra.mxu0 0.0
  %1120 = vmatprep.subr.mxu0 0.0
  %1121 = vmatpush2.msra.mxu0 0.0
  %1122 = vmatprep.subr.mxu0 0.0
  %1123 = vmatpush2.msra.mxu0 0.0
  %1124 = vmatprep.subr.mxu0 0.0
  %1125 = vmatpush2.msra.mxu0 0.0
  %1126 = vmatprep.subr.mxu0 0.0
  %1127 = vmatpush2.msra.mxu0 0.0
  %1128 = vmatprep.subr.mxu0 0.0
  %1129 = vmatpush2.msra.mxu0 0.0
  %1130 = vmatprep.subr.mxu0 0.0
  %1131 = vmatpush2.msra.mxu0 0.0
  %1132 = vmatprep.subr.mxu0 0.0
  %1133 = vmatpush2.msra.mxu0 0.0
  %1134 = vmatprep.subr.mxu0 0.0
  %1135 = vmatpush2.msra.mxu0 0.0
  %1136 = vmatprep.mubr.f32.mxu0 0.0
  %1137 = vmatmul.mubr.f32.gmra.mxu0 %v1051
  %v1138 = vpop.f32.mrf.mxu0
  %v1139 = vadd.f32 0.0, %v1138
  %v1140 = vpop.f32.mrf.mxu0
  %1141 = vmatprep.mubr.f32.mxu0 0.0
  %1142 = vmatmul.mubr.f32.gmra.mxu0 %v1052
  %v1143 = vpop.f32.mrf.mxu0
  %v1144 = vadd.f32 0.0, %v1143
  %v1145 = vpop.f32.mrf.mxu0
  %1146 = vmatprep.mubr.f32.mxu0 0.0
  %1147 = vmatmul.mubr.f32.gmra.mxu0 %v1053
  %v1148 = vpop.f32.mrf.mxu0
  %v1149 = vadd.f32 0.0, %v1148
  %v1150 = vpop.f32.mrf.mxu0
  %1151 = vmatprep.mubr.f32.mxu0 0.0
  %1152 = vmatmul.mubr.f32.gmra.mxu0 %v1054
  %v1153 = vpop.f32.mrf.mxu0
  %v1154 = vadd.f32 0.0, %v1153
  %v1155 = vpop.f32.mrf.mxu0
  %1156 = vdwg.mxu0
  %v1157 = vadd.f32 %v1047, %v1139
  %v1158 = vadd.f32 %v1048, %v1144
  %v1159 = vadd.f32 %v1049, %v1149
  %v1160 = vadd.f32 %v1050, %v1154
  %v1161 = vld [vmem:[%s4] sm:$0x1]
  %v1163 = vlaneseq
  %v1164 = vshrl.u32 %v1163, 7
  %v1165 = vsub.s32 0, %v1164
  %v1166 = vrot.slane %v1161, %v1165
  %v1168 = vadd.f32 %v1157, %v1166
  %v1169 = vadd.f32 %v1158, %v1166
  %v1170 = vadd.f32 %v1159, %v1166
  %v1171 = vadd.f32 %v1160, %v1166
  %vm1172 = vcmp.gt.f32.partialorder %v1168, 0.0
  %vm1173 = vcmp.gt.f32.partialorder %v1169, 0.0
  %vm1174 = vcmp.gt.f32.partialorder %v1170, 0.0
  %vm1175 = vcmp.gt.f32.partialorder %v1171, 0.0
  %v1176 = vmul.f32 %v1168, 0.01
  %v1177 = vmul.f32 %v1169, 0.01
  %v1178 = vmul.f32 %v1170, 0.01
  %v1179 = vmul.f32 %v1171, 0.01
  %v1180 = vsel %vm1172, %v1168, %v1176
  %v1181 = vsel %vm1173, %v1169, %v1177
  %v1182 = vsel %vm1174, %v1170, %v1178
  %v1183 = vsel %vm1175, %v1171, %v1179
  %1184 = vst [vmem:[#allocation2 + $0x8] sm:$0xff] %v1180
  %1185 = vst [vmem:[#allocation2 + $0x10] sm:$0xff] %v1181
  %1186 = vst [vmem:[#allocation2 + $0x28] sm:$0xff] %v1182
  %1187 = vst [vmem:[#allocation2 + $0x30] sm:$0xff] %v1183
  %v1188 = vld [vmem:[#allocation2 + $0x7] sm:$0xff]
  %v1189 = vld [vmem:[#allocation2 + $0xf] sm:$0xff]
  %v1190 = vld [vmem:[#allocation2 + $0x27] sm:$0xff]
  %v1191 = vld [vmem:[#allocation2 + $0x2f] sm:$0xff]
  %v1192 = vld [vmem:[%s5] sm:$0xff]
  %v1193 = vld [vmem:[%s5 + $0x8] sm:$0xff]
  %v1194 = vld [vmem:[%s5 + $0x10] sm:$0xff]
  %v1195 = vld [vmem:[%s5 + $0x18] sm:$0xff]
  %v1196 = vld [vmem:[%s5 + $0x20] sm:$0xff]
  %v1197 = vld [vmem:[%s5 + $0x28] sm:$0xff]
  %v1198 = vld [vmem:[%s5 + $0x30] sm:$0xff]
  %v1199 = vld [vmem:[%s5 + $0x38] sm:$0xff]
  %v1200 = vld [vmem:[%s5 + $0x40] sm:$0xff]
  %v1201 = vld [vmem:[%s5 + $0x48] sm:$0xff]
  %v1202 = vld [vmem:[%s5 + $0x50] sm:$0xff]
  %v1203 = vld [vmem:[%s5 + $0x58] sm:$0xff]
  %v1204 = vld [vmem:[%s5 + $0x60] sm:$0xff]
  %v1205 = vld [vmem:[%s5 + $0x68] sm:$0xff]
  %v1206 = vld [vmem:[%s5 + $0x70] sm:$0xff]
  %v1207 = vld [vmem:[%s5 + $0x78] sm:$0xff]
  %v1208 = vld [vmem:[#allocation2 + $0x8] sm:$0xff]
  %v1209 = vld [vmem:[#allocation2 + $0x10] sm:$0xff]
  %v1210 = vld [vmem:[#allocation2 + $0x28] sm:$0xff]
  %v1211 = vld [vmem:[#allocation2 + $0x30] sm:$0xff]
  %s1212 = scalar_lea.vmem %s5, 128
  %v1213 = vld [vmem:[%s1212] sm:$0xff]
  %v1214 = vld [vmem:[%s1212 + $0x8] sm:$0xff]
  %v1215 = vld [vmem:[%s1212 + $0x10] sm:$0xff]
  %v1216 = vld [vmem:[%s1212 + $0x18] sm:$0xff]
  %v1217 = vld [vmem:[%s1212 + $0x20] sm:$0xff]
  %v1218 = vld [vmem:[%s1212 + $0x28] sm:$0xff]
  %v1219 = vld [vmem:[%s1212 + $0x30] sm:$0xff]
  %v1220 = vld [vmem:[%s1212 + $0x38] sm:$0xff]
  %v1221 = vld [vmem:[%s1212 + $0x40] sm:$0xff]
  %v1222 = vld [vmem:[%s1212 + $0x48] sm:$0xff]
  %v1223 = vld [vmem:[%s1212 + $0x50] sm:$0xff]
  %v1224 = vld [vmem:[%s1212 + $0x58] sm:$0xff]
  %v1225 = vld [vmem:[%s1212 + $0x60] sm:$0xff]
  %v1226 = vld [vmem:[%s1212 + $0x68] sm:$0xff]
  %v1227 = vld [vmem:[%s1212 + $0x70] sm:$0xff]
  %v1228 = vld [vmem:[%s1212 + $0x78] sm:$0xff]
  %1229 = vmatprep.subr.mxu0 0.0
  %1230 = vmatpush1.msra.mxu0 %v1228
  %1231 = vmatprep.subr.mxu0 0.0
  %1232 = vmatpush1.msra.mxu0 %v1227
  %1233 = vmatprep.subr.mxu0 0.0
  %1234 = vmatpush1.msra.mxu0 %v1226
  %1235 = vmatprep.subr.mxu0 0.0
  %1236 = vmatpush1.msra.mxu0 %v1225
  %1237 = vmatprep.subr.mxu0 0.0
  %1238 = vmatpush1.msra.mxu0 %v1224
  %1239 = vmatprep.subr.mxu0 0.0
  %1240 = vmatpush1.msra.mxu0 %v1223
  %1241 = vmatprep.subr.mxu0 0.0
  %1242 = vmatpush1.msra.mxu0 %v1222
  %1243 = vmatprep.subr.mxu0 0.0
  %1244 = vmatpush1.msra.mxu0 %v1221
  %1245 = vmatprep.subr.mxu0 0.0
  %1246 = vmatpush1.msra.mxu0 %v1220
  %1247 = vmatprep.subr.mxu0 0.0
  %1248 = vmatpush1.msra.mxu0 %v1219
  %1249 = vmatprep.subr.mxu0 0.0
  %1250 = vmatpush1.msra.mxu0 %v1218
  %1251 = vmatprep.subr.mxu0 0.0
  %1252 = vmatpush1.msra.mxu0 %v1217
  %1253 = vmatprep.subr.mxu0 0.0
  %1254 = vmatpush1.msra.mxu0 %v1216
  %1255 = vmatprep.subr.mxu0 0.0
  %1256 = vmatpush1.msra.mxu0 %v1215
  %1257 = vmatprep.subr.mxu0 0.0
  %1258 = vmatpush1.msra.mxu0 %v1214
  %1259 = vmatprep.subr.mxu0 0.0
  %1260 = vmatpush1.msra.mxu0 %v1213
  %1261 = vmatprep.subr.mxu0 0.0
  %1262 = vmatpush2.msra.mxu0 0.0
  %1263 = vmatprep.subr.mxu0 0.0
  %1264 = vmatpush2.msra.mxu0 0.0
  %1265 = vmatprep.subr.mxu0 0.0
  %1266 = vmatpush2.msra.mxu0 0.0
  %1267 = vmatprep.subr.mxu0 0.0
  %1268 = vmatpush2.msra.mxu0 0.0
  %1269 = vmatprep.subr.mxu0 0.0
  %1270 = vmatpush2.msra.mxu0 0.0
  %1271 = vmatprep.subr.mxu0 0.0
  %1272 = vmatpush2.msra.mxu0 0.0
  %1273 = vmatprep.subr.mxu0 0.0
  %1274 = vmatpush2.msra.mxu0 0.0
  %1275 = vmatprep.subr.mxu0 0.0
  %1276 = vmatpush2.msra.mxu0 0.0
  %1277 = vmatprep.subr.mxu0 0.0
  %1278 = vmatpush2.msra.mxu0 0.0
  %1279 = vmatprep.subr.mxu0 0.0
  %1280 = vmatpush2.msra.mxu0 0.0
  %1281 = vmatprep.subr.mxu0 0.0
  %1282 = vmatpush2.msra.mxu0 0.0
  %1283 = vmatprep.subr.mxu0 0.0
  %1284 = vmatpush2.msra.mxu0 0.0
  %1285 = vmatprep.subr.mxu0 0.0
  %1286 = vmatpush2.msra.mxu0 0.0
  %1287 = vmatprep.subr.mxu0 0.0
  %1288 = vmatpush2.msra.mxu0 0.0
  %1289 = vmatprep.subr.mxu0 0.0
  %1290 = vmatpush2.msra.mxu0 0.0
  %1291 = vmatprep.subr.mxu0 0.0
  %1292 = vmatpush2.msra.mxu0 0.0
  %1293 = vmatprep.mubr.f32.mxu0 0.0
  %1294 = vmatmul.mubr.f32.gmra.mxu0 %v1208
  %v1295 = vpop.f32.mrf.mxu0
  %v1296 = vadd.f32 0.0, %v1295
  %v1297 = vpop.f32.mrf.mxu0
  %1298 = vmatprep.mubr.f32.mxu0 0.0
  %1299 = vmatmul.mubr.f32.gmra.mxu0 %v1209
  %v1300 = vpop.f32.mrf.mxu0
  %v1301 = vadd.f32 0.0, %v1300
  %v1302 = vpop.f32.mrf.mxu0
  %1303 = vmatprep.mubr.f32.mxu0 0.0
  %1304 = vmatmul.mubr.f32.gmra.mxu0 %v1210
  %v1305 = vpop.f32.mrf.mxu0
  %v1306 = vadd.f32 0.0, %v1305
  %v1307 = vpop.f32.mrf.mxu0
  %1308 = vmatprep.mubr.f32.mxu0 0.0
  %1309 = vmatmul.mubr.f32.gmra.mxu0 %v1211
  %v1310 = vpop.f32.mrf.mxu0
  %v1311 = vadd.f32 0.0, %v1310
  %v1312 = vpop.f32.mrf.mxu0
  %1313 = vdwg.mxu0
  %1314 = vmatprep.subr.mxu0 0.0
  %1315 = vmatpush1.msra.mxu0 %v1207
  %1316 = vmatprep.subr.mxu0 0.0
  %1317 = vmatpush1.msra.mxu0 %v1206
  %1318 = vmatprep.subr.mxu0 0.0
  %1319 = vmatpush1.msra.mxu0 %v1205
  %1320 = vmatprep.subr.mxu0 0.0
  %1321 = vmatpush1.msra.mxu0 %v1204
  %1322 = vmatprep.subr.mxu0 0.0
  %1323 = vmatpush1.msra.mxu0 %v1203
  %1324 = vmatprep.subr.mxu0 0.0
  %1325 = vmatpush1.msra.mxu0 %v1202
  %1326 = vmatprep.subr.mxu0 0.0
  %1327 = vmatpush1.msra.mxu0 %v1201
  %1328 = vmatprep.subr.mxu0 0.0
  %1329 = vmatpush1.msra.mxu0 %v1200
  %1330 = vmatprep.subr.mxu0 0.0
  %1331 = vmatpush1.msra.mxu0 %v1199
  %1332 = vmatprep.subr.mxu0 0.0
  %1333 = vmatpush1.msra.mxu0 %v1198
  %1334 = vmatprep.subr.mxu0 0.0
  %1335 = vmatpush1.msra.mxu0 %v1197
  %1336 = vmatprep.subr.mxu0 0.0
  %1337 = vmatpush1.msra.mxu0 %v1196
  %1338 = vmatprep.subr.mxu0 0.0
  %1339 = vmatpush1.msra.mxu0 %v1195
  %1340 = vmatprep.subr.mxu0 0.0
  %1341 = vmatpush1.msra.mxu0 %v1194
  %1342 = vmatprep.subr.mxu0 0.0
  %1343 = vmatpush1.msra.mxu0 %v1193
  %1344 = vmatprep.subr.mxu0 0.0
  %1345 = vmatpush1.msra.mxu0 %v1192
  %1346 = vmatprep.subr.mxu0 0.0
  %1347 = vmatpush2.msra.mxu0 0.0
  %1348 = vmatprep.subr.mxu0 0.0
  %1349 = vmatpush2.msra.mxu0 0.0
  %1350 = vmatprep.subr.mxu0 0.0
  %1351 = vmatpush2.msra.mxu0 0.0
  %1352 = vmatprep.subr.mxu0 0.0
  %1353 = vmatpush2.msra.mxu0 0.0
  %1354 = vmatprep.subr.mxu0 0.0
  %1355 = vmatpush2.msra.mxu0 0.0
  %1356 = vmatprep.subr.mxu0 0.0
  %1357 = vmatpush2.msra.mxu0 0.0
  %1358 = vmatprep.subr.mxu0 0.0
  %1359 = vmatpush2.msra.mxu0 0.0
  %1360 = vmatprep.subr.mxu0 0.0
  %1361 = vmatpush2.msra.mxu0 0.0
  %1362 = vmatprep.subr.mxu0 0.0
  %1363 = vmatpush2.msra.mxu0 0.0
  %1364 = vmatprep.subr.mxu0 0.0
  %1365 = vmatpush2.msra.mxu0 0.0
  %1366 = vmatprep.subr.mxu0 0.0
  %1367 = vmatpush2.msra.mxu0 0.0
  %1368 = vmatprep.subr.mxu0 0.0
  %1369 = vmatpush2.msra.mxu0 0.0
  %1370 = vmatprep.subr.mxu0 0.0
  %1371 = vmatpush2.msra.mxu0 0.0
  %1372 = vmatprep.subr.mxu0 0.0
  %1373 = vmatpush2.msra.mxu0 0.0
  %1374 = vmatprep.subr.mxu0 0.0
  %1375 = vmatpush2.msra.mxu0 0.0
  %1376 = vmatprep.subr.mxu0 0.0
  %1377 = vmatpush2.msra.mxu0 0.0
  %1378 = vmatprep.mubr.f32.mxu0 0.0
  %1379 = vmatmul.mubr.f32.gmra.mxu0 %v1188
  %v1380 = vpop.f32.mrf.mxu0
  %v1381 = vadd.f32 %v1296, %v1380
  %v1382 = vpop.f32.mrf.mxu0
  %1383 = vmatprep.mubr.f32.mxu0 0.0
  %1384 = vmatmul.mubr.f32.gmra.mxu0 %v1189
  %v1385 = vpop.f32.mrf.mxu0
  %v1386 = vadd.f32 %v1301, %v1385
  %v1387 = vpop.f32.mrf.mxu0
  %1388 = vmatprep.mubr.f32.mxu0 0.0
  %1389 = vmatmul.mubr.f32.gmra.mxu0 %v1190
  %v1390 = vpop.f32.mrf.mxu0
  %v1391 = vadd.f32 %v1306, %v1390
  %v1392 = vpop.f32.mrf.mxu0
  %1393 = vmatprep.mubr.f32.mxu0 0.0
  %1394 = vmatmul.mubr.f32.gmra.mxu0 %v1191
  %v1395 = vpop.f32.mrf.mxu0
  %v1396 = vadd.f32 %v1311, %v1395
  %v1397 = vpop.f32.mrf.mxu0
  %1398 = vdwg.mxu0
  %v1399 = vld [vmem:[#allocation2 + $0x9] sm:$0xff]
  %v1400 = vld [vmem:[#allocation2 + $0x11] sm:$0xff]
  %v1401 = vld [vmem:[#allocation2 + $0x29] sm:$0xff]
  %v1402 = vld [vmem:[#allocation2 + $0x31] sm:$0xff]
  %s1403 = scalar_lea.vmem %s5, 256
  %v1404 = vld [vmem:[%s1403] sm:$0xff]
  %v1405 = vld [vmem:[%s1403 + $0x8] sm:$0xff]
  %v1406 = vld [vmem:[%s1403 + $0x10] sm:$0xff]
  %v1407 = vld [vmem:[%s1403 + $0x18] sm:$0xff]
  %v1408 = vld [vmem:[%s1403 + $0x20] sm:$0xff]
  %v1409 = vld [vmem:[%s1403 + $0x28] sm:$0xff]
  %v1410 = vld [vmem:[%s1403 + $0x30] sm:$0xff]
  %v1411 = vld [vmem:[%s1403 + $0x38] sm:$0xff]
  %v1412 = vld [vmem:[%s1403 + $0x40] sm:$0xff]
  %v1413 = vld [vmem:[%s1403 + $0x48] sm:$0xff]
  %v1414 = vld [vmem:[%s1403 + $0x50] sm:$0xff]
  %v1415 = vld [vmem:[%s1403 + $0x58] sm:$0xff]
  %v1416 = vld [vmem:[%s1403 + $0x60] sm:$0xff]
  %v1417 = vld [vmem:[%s1403 + $0x68] sm:$0xff]
  %v1418 = vld [vmem:[%s1403 + $0x70] sm:$0xff]
  %v1419 = vld [vmem:[%s1403 + $0x78] sm:$0xff]
  %1420 = vmatprep.subr.mxu0 0.0
  %1421 = vmatpush1.msra.mxu0 %v1419
  %1422 = vmatprep.subr.mxu0 0.0
  %1423 = vmatpush1.msra.mxu0 %v1418
  %1424 = vmatprep.subr.mxu0 0.0
  %1425 = vmatpush1.msra.mxu0 %v1417
  %1426 = vmatprep.subr.mxu0 0.0
  %1427 = vmatpush1.msra.mxu0 %v1416
  %1428 = vmatprep.subr.mxu0 0.0
  %1429 = vmatpush1.msra.mxu0 %v1415
  %1430 = vmatprep.subr.mxu0 0.0
  %1431 = vmatpush1.msra.mxu0 %v1414
  %1432 = vmatprep.subr.mxu0 0.0
  %1433 = vmatpush1.msra.mxu0 %v1413
  %1434 = vmatprep.subr.mxu0 0.0
  %1435 = vmatpush1.msra.mxu0 %v1412
  %1436 = vmatprep.subr.mxu0 0.0
  %1437 = vmatpush1.msra.mxu0 %v1411
  %1438 = vmatprep.subr.mxu0 0.0
  %1439 = vmatpush1.msra.mxu0 %v1410
  %1440 = vmatprep.subr.mxu0 0.0
  %1441 = vmatpush1.msra.mxu0 %v1409
  %1442 = vmatprep.subr.mxu0 0.0
  %1443 = vmatpush1.msra.mxu0 %v1408
  %1444 = vmatprep.subr.mxu0 0.0
  %1445 = vmatpush1.msra.mxu0 %v1407
  %1446 = vmatprep.subr.mxu0 0.0
  %1447 = vmatpush1.msra.mxu0 %v1406
  %1448 = vmatprep.subr.mxu0 0.0
  %1449 = vmatpush1.msra.mxu0 %v1405
  %1450 = vmatprep.subr.mxu0 0.0
  %1451 = vmatpush1.msra.mxu0 %v1404
  %1452 = vmatprep.subr.mxu0 0.0
  %1453 = vmatpush2.msra.mxu0 0.0
  %1454 = vmatprep.subr.mxu0 0.0
  %1455 = vmatpush2.msra.mxu0 0.0
  %1456 = vmatprep.subr.mxu0 0.0
  %1457 = vmatpush2.msra.mxu0 0.0
  %1458 = vmatprep.subr.mxu0 0.0
  %1459 = vmatpush2.msra.mxu0 0.0
  %1460 = vmatprep.subr.mxu0 0.0
  %1461 = vmatpush2.msra.mxu0 0.0
  %1462 = vmatprep.subr.mxu0 0.0
  %1463 = vmatpush2.msra.mxu0 0.0
  %1464 = vmatprep.subr.mxu0 0.0
  %1465 = vmatpush2.msra.mxu0 0.0
  %1466 = vmatprep.subr.mxu0 0.0
  %1467 = vmatpush2.msra.mxu0 0.0
  %1468 = vmatprep.subr.mxu0 0.0
  %1469 = vmatpush2.msra.mxu0 0.0
  %1470 = vmatprep.subr.mxu0 0.0
  %1471 = vmatpush2.msra.mxu0 0.0
  %1472 = vmatprep.subr.mxu0 0.0
  %1473 = vmatpush2.msra.mxu0 0.0
  %1474 = vmatprep.subr.mxu0 0.0
  %1475 = vmatpush2.msra.mxu0 0.0
  %1476 = vmatprep.subr.mxu0 0.0
  %1477 = vmatpush2.msra.mxu0 0.0
  %1478 = vmatprep.subr.mxu0 0.0
  %1479 = vmatpush2.msra.mxu0 0.0
  %1480 = vmatprep.subr.mxu0 0.0
  %1481 = vmatpush2.msra.mxu0 0.0
  %1482 = vmatprep.subr.mxu0 0.0
  %1483 = vmatpush2.msra.mxu0 0.0
  %1484 = vmatprep.mubr.f32.mxu0 0.0
  %1485 = vmatmul.mubr.f32.gmra.mxu0 %v1399
  %v1486 = vpop.f32.mrf.mxu0
  %v1487 = vadd.f32 0.0, %v1486
  %v1488 = vpop.f32.mrf.mxu0
  %1489 = vmatprep.mubr.f32.mxu0 0.0
  %1490 = vmatmul.mubr.f32.gmra.mxu0 %v1400
  %v1491 = vpop.f32.mrf.mxu0
  %v1492 = vadd.f32 0.0, %v1491
  %v1493 = vpop.f32.mrf.mxu0
  %1494 = vmatprep.mubr.f32.mxu0 0.0
  %1495 = vmatmul.mubr.f32.gmra.mxu0 %v1401
  %v1496 = vpop.f32.mrf.mxu0
  %v1497 = vadd.f32 0.0, %v1496
  %v1498 = vpop.f32.mrf.mxu0
  %1499 = vmatprep.mubr.f32.mxu0 0.0
  %1500 = vmatmul.mubr.f32.gmra.mxu0 %v1402
  %v1501 = vpop.f32.mrf.mxu0
  %v1502 = vadd.f32 0.0, %v1501
  %v1503 = vpop.f32.mrf.mxu0
  %1504 = vdwg.mxu0
  %v1505 = vadd.f32 %v1381, %v1487
  %v1506 = vadd.f32 %v1386, %v1492
  %v1507 = vadd.f32 %v1391, %v1497
  %v1508 = vadd.f32 %v1396, %v1502
  %v1509 = vld [vmem:[%s6] sm:$0x1]
  %v1511 = vlaneseq
  %v1512 = vshrl.u32 %v1511, 7
  %v1513 = vsub.s32 0, %v1512
  %v1514 = vrot.slane %v1509, %v1513
  %v1516 = vadd.f32 %v1505, %v1514
  %v1517 = vadd.f32 %v1506, %v1514
  %v1518 = vadd.f32 %v1507, %v1514
  %v1519 = vadd.f32 %v1508, %v1514
  %vm1520 = vcmp.gt.f32.partialorder %v1516, 0.0
  %vm1521 = vcmp.gt.f32.partialorder %v1517, 0.0
  %vm1522 = vcmp.gt.f32.partialorder %v1518, 0.0
  %vm1523 = vcmp.gt.f32.partialorder %v1519, 0.0
  %v1524 = vmul.f32 %v1516, 0.01
  %v1525 = vmul.f32 %v1517, 0.01
  %v1526 = vmul.f32 %v1518, 0.01
  %v1527 = vmul.f32 %v1519, 0.01
  %v1528 = vsel %vm1520, %v1516, %v1524
  %v1529 = vsel %vm1521, %v1517, %v1525
  %v1530 = vsel %vm1522, %v1518, %v1526
  %v1531 = vsel %vm1523, %v1519, %v1527
  %v1532 = vld [vmem:[%s7] sm:$0xff]
  %v1533 = vld [vmem:[%s7 + $0x8] sm:$0xff]
  %v1534 = vld [vmem:[%s7 + $0x10] sm:$0xff]
  %v1535 = vld [vmem:[%s7 + $0x18] sm:$0xff]
  %v1536 = vld [vmem:[%s7 + $0x20] sm:$0xff]
  %v1537 = vld [vmem:[%s7 + $0x28] sm:$0xff]
  %v1538 = vld [vmem:[%s7 + $0x30] sm:$0xff]
  %v1539 = vld [vmem:[%s7 + $0x38] sm:$0xff]
  %v1540 = vld [vmem:[%s7 + $0x40] sm:$0xff]
  %v1541 = vld [vmem:[%s7 + $0x48] sm:$0xff]
  %v1542 = vld [vmem:[%s7 + $0x50] sm:$0xff]
  %v1543 = vld [vmem:[%s7 + $0x58] sm:$0xff]
  %v1544 = vld [vmem:[%s7 + $0x60] sm:$0xff]
  %v1545 = vld [vmem:[%s7 + $0x68] sm:$0xff]
  %v1546 = vld [vmem:[%s7 + $0x70] sm:$0xff]
  %v1547 = vld [vmem:[%s7 + $0x78] sm:$0xff]
  %v1548 = vld [vmem:[%s8] sm:$0x1]
  %v1550 = vlaneseq
  %v1551 = vshrl.u32 %v1550, 7
  %v1552 = vsub.s32 0, %v1551
  %v1553 = vrot.slane %v1548, %v1552
  %1555 = vmatprep.subr.mxu0 0.0
  %1556 = vmatpush1.msra.mxu0 %v1547
  %1557 = vmatprep.subr.mxu0 0.0
  %1558 = vmatpush1.msra.mxu0 %v1546
  %1559 = vmatprep.subr.mxu0 0.0
  %1560 = vmatpush1.msra.mxu0 %v1545
  %1561 = vmatprep.subr.mxu0 0.0
  %1562 = vmatpush1.msra.mxu0 %v1544
  %1563 = vmatprep.subr.mxu0 0.0
  %1564 = vmatpush1.msra.mxu0 %v1543
  %1565 = vmatprep.subr.mxu0 0.0
  %1566 = vmatpush1.msra.mxu0 %v1542
  %1567 = vmatprep.subr.mxu0 0.0
  %1568 = vmatpush1.msra.mxu0 %v1541
  %1569 = vmatprep.subr.mxu0 0.0
  %1570 = vmatpush1.msra.mxu0 %v1540
  %1571 = vmatprep.subr.mxu0 0.0
  %1572 = vmatpush1.msra.mxu0 %v1539
  %1573 = vmatprep.subr.mxu0 0.0
  %1574 = vmatpush1.msra.mxu0 %v1538
  %1575 = vmatprep.subr.mxu0 0.0
  %1576 = vmatpush1.msra.mxu0 %v1537
  %1577 = vmatprep.subr.mxu0 0.0
  %1578 = vmatpush1.msra.mxu0 %v1536
  %1579 = vmatprep.subr.mxu0 0.0
  %1580 = vmatpush1.msra.mxu0 %v1535
  %1581 = vmatprep.subr.mxu0 0.0
  %1582 = vmatpush1.msra.mxu0 %v1534
  %1583 = vmatprep.subr.mxu0 0.0
  %1584 = vmatpush1.msra.mxu0 %v1533
  %1585 = vmatprep.subr.mxu0 0.0
  %1586 = vmatpush1.msra.mxu0 %v1532
  %1587 = vmatprep.subr.mxu0 0.0
  %1588 = vmatpush2.msra.mxu0 0.0
  %1589 = vmatprep.subr.mxu0 0.0
  %1590 = vmatpush2.msra.mxu0 0.0
  %1591 = vmatprep.subr.mxu0 0.0
  %1592 = vmatpush2.msra.mxu0 0.0
  %1593 = vmatprep.subr.mxu0 0.0
  %1594 = vmatpush2.msra.mxu0 0.0
  %1595 = vmatprep.subr.mxu0 0.0
  %1596 = vmatpush2.msra.mxu0 0.0
  %1597 = vmatprep.subr.mxu0 0.0
  %1598 = vmatpush2.msra.mxu0 0.0
  %1599 = vmatprep.subr.mxu0 0.0
  %1600 = vmatpush2.msra.mxu0 0.0
  %1601 = vmatprep.subr.mxu0 0.0
  %1602 = vmatpush2.msra.mxu0 0.0
  %1603 = vmatprep.subr.mxu0 0.0
  %1604 = vmatpush2.msra.mxu0 0.0
  %1605 = vmatprep.subr.mxu0 0.0
  %1606 = vmatpush2.msra.mxu0 0.0
  %1607 = vmatprep.subr.mxu0 0.0
  %1608 = vmatpush2.msra.mxu0 0.0
  %1609 = vmatprep.subr.mxu0 0.0
  %1610 = vmatpush2.msra.mxu0 0.0
  %1611 = vmatprep.subr.mxu0 0.0
  %1612 = vmatpush2.msra.mxu0 0.0
  %1613 = vmatprep.subr.mxu0 0.0
  %1614 = vmatpush2.msra.mxu0 0.0
  %1615 = vmatprep.subr.mxu0 0.0
  %1616 = vmatpush2.msra.mxu0 0.0
  %1617 = vmatprep.subr.mxu0 0.0
  %1618 = vmatpush2.msra.mxu0 0.0
  %1619 = vmatprep.mubr.f32.mxu0 0.0
  %1620 = vmatmul.mubr.f32.gmra.mxu0 %v1528
  %v1621 = vpop.f32.mrf.mxu0
  %v1622 = vadd.f32 %v1553, %v1621
  %v1623 = vpop.f32.mrf.mxu0
  %1624 = vmatprep.mubr.f32.mxu0 0.0
  %1625 = vmatmul.mubr.f32.gmra.mxu0 %v1529
  %v1626 = vpop.f32.mrf.mxu0
  %v1627 = vadd.f32 %v1553, %v1626
  %v1628 = vpop.f32.mrf.mxu0
  %1629 = vmatprep.mubr.f32.mxu0 0.0
  %1630 = vmatmul.mubr.f32.gmra.mxu0 %v1530
  %v1631 = vpop.f32.mrf.mxu0
  %v1632 = vadd.f32 %v1553, %v1631
  %v1633 = vpop.f32.mrf.mxu0
  %1634 = vmatprep.mubr.f32.mxu0 0.0
  %1635 = vmatmul.mubr.f32.gmra.mxu0 %v1531
  %v1636 = vpop.f32.mrf.mxu0
  %v1637 = vadd.f32 %v1553, %v1636
  %v1638 = vpop.f32.mrf.mxu0
  %1639 = vdwg.mxu0
  %vm1640 = vcmp.gt.f32.partialorder %v1622, 0.0
  %vm1641 = vcmp.gt.f32.partialorder %v1627, 0.0
  %vm1642 = vcmp.gt.f32.partialorder %v1632, 0.0
  %vm1643 = vcmp.gt.f32.partialorder %v1637, 0.0
  %v1644 = vmul.f32 %v1622, 0.01
  %v1645 = vmul.f32 %v1627, 0.01
  %v1646 = vmul.f32 %v1632, 0.01
  %v1647 = vmul.f32 %v1637, 0.01
  %v1648 = vsel %vm1640, %v1622, %v1644
  %v1649 = vsel %vm1641, %v1627, %v1645
  %v1650 = vsel %vm1642, %v1632, %v1646
  %v1651 = vsel %vm1643, %v1637, %v1647
  %v1652 = vld [vmem:[%s9] sm:$0xff]
  %v1653 = vld [vmem:[%s9 + $0x8] sm:$0xff]
  %v1654 = vld [vmem:[%s9 + $0x10] sm:$0xff]
  %v1655 = vld [vmem:[%s9 + $0x18] sm:$0xff]
  %v1656 = vld [vmem:[%s10] sm:$0x1]
  %v1658 = vlaneseq
  %v1659 = vshrl.u32 %v1658, 7
  %v1660 = vsub.s32 0, %v1659
  %v1661 = vrot.slane %v1656, %v1660
  %vm1663 = vcmask 261120
  %v1665 = vsel %vm1663, %v1648, 0
  %v1668 = vsel %vm1663, %v1649, 0
  %v1671 = vsel %vm1663, %v1650, 0
  %v1674 = vsel %vm1663, %v1651, 0
  %1676 = vmatprep.subr.mxu0 0.0
  %1677 = vmatpush1.msra.mxu0 0.0
  %1678 = vmatprep.subr.mxu0 0.0
  %1679 = vmatpush1.msra.mxu0 0.0
  %1680 = vmatprep.subr.mxu0 0.0
  %1681 = vmatpush1.msra.mxu0 0.0
  %1682 = vmatprep.subr.mxu0 0.0
  %1683 = vmatpush1.msra.mxu0 0.0
  %1684 = vmatprep.subr.mxu0 0.0
  %1685 = vmatpush1.msra.mxu0 0.0
  %1686 = vmatprep.subr.mxu0 0.0
  %1687 = vmatpush1.msra.mxu0 0.0
  %1688 = vmatprep.subr.mxu0 0.0
  %1689 = vmatpush1.msra.mxu0 0.0
  %1690 = vmatprep.subr.mxu0 0.0
  %1691 = vmatpush1.msra.mxu0 0.0
  %1692 = vmatprep.subr.mxu0 0.0
  %1693 = vmatpush1.msra.mxu0 0.0
  %1694 = vmatprep.subr.mxu0 0.0
  %1695 = vmatpush1.msra.mxu0 0.0
  %1696 = vmatprep.subr.mxu0 0.0
  %1697 = vmatpush1.msra.mxu0 0.0
  %1698 = vmatprep.subr.mxu0 0.0
  %1699 = vmatpush1.msra.mxu0 0.0
  %1700 = vmatprep.subr.mxu0 0.0
  %1701 = vmatpush1.msra.mxu0 %v1655
  %1702 = vmatprep.subr.mxu0 0.0
  %1703 = vmatpush1.msra.mxu0 %v1654
  %1704 = vmatprep.subr.mxu0 0.0
  %1705 = vmatpush1.msra.mxu0 %v1653
  %1706 = vmatprep.subr.mxu0 0.0
  %1707 = vmatpush1.msra.mxu0 %v1652
  %1708 = vmatprep.subr.mxu0 0.0
  %1709 = vmatpush2.msra.mxu0 0.0
  %1710 = vmatprep.subr.mxu0 0.0
  %1711 = vmatpush2.msra.mxu0 0.0
  %1712 = vmatprep.subr.mxu0 0.0
  %1713 = vmatpush2.msra.mxu0 0.0
  %1714 = vmatprep.subr.mxu0 0.0
  %1715 = vmatpush2.msra.mxu0 0.0
  %1716 = vmatprep.subr.mxu0 0.0
  %1717 = vmatpush2.msra.mxu0 0.0
  %1718 = vmatprep.subr.mxu0 0.0
  %1719 = vmatpush2.msra.mxu0 0.0
  %1720 = vmatprep.subr.mxu0 0.0
  %1721 = vmatpush2.msra.mxu0 0.0
  %1722 = vmatprep.subr.mxu0 0.0
  %1723 = vmatpush2.msra.mxu0 0.0
  %1724 = vmatprep.subr.mxu0 0.0
  %1725 = vmatpush2.msra.mxu0 0.0
  %1726 = vmatprep.subr.mxu0 0.0
  %1727 = vmatpush2.msra.mxu0 0.0
  %1728 = vmatprep.subr.mxu0 0.0
  %1729 = vmatpush2.msra.mxu0 0.0
  %1730 = vmatprep.subr.mxu0 0.0
  %1731 = vmatpush2.msra.mxu0 0.0
  %1732 = vmatprep.subr.mxu0 0.0
  %1733 = vmatpush2.msra.mxu0 0.0
  %1734 = vmatprep.subr.mxu0 0.0
  %1735 = vmatpush2.msra.mxu0 0.0
  %1736 = vmatprep.subr.mxu0 0.0
  %1737 = vmatpush2.msra.mxu0 0.0
  %1738 = vmatprep.subr.mxu0 0.0
  %1739 = vmatpush2.msra.mxu0 0.0
  %1740 = vmatprep.mubr.f32.mxu0 0.0
  %1741 = vmatmul.mubr.f32.gmra.mxu0 %v1665
  %v1742 = vpop.f32.mrf.mxu0
  %v1743 = vadd.f32 %v1661, %v1742
  %v1744 = vpop.f32.mrf.mxu0
  %1745 = vmatprep.mubr.f32.mxu0 0.0
  %1746 = vmatmul.mubr.f32.gmra.mxu0 %v1668
  %v1747 = vpop.f32.mrf.mxu0
  %v1748 = vadd.f32 %v1661, %v1747
  %v1749 = vpop.f32.mrf.mxu0
  %1750 = vmatprep.mubr.f32.mxu0 0.0
  %1751 = vmatmul.mubr.f32.gmra.mxu0 %v1671
  %v1752 = vpop.f32.mrf.mxu0
  %v1753 = vadd.f32 %v1661, %v1752
  %v1754 = vpop.f32.mrf.mxu0
  %1755 = vmatprep.mubr.f32.mxu0 0.0
  %1756 = vmatmul.mubr.f32.gmra.mxu0 %v1674
  %v1757 = vpop.f32.mrf.mxu0
  %v1758 = vadd.f32 %v1661, %v1757
  %v1759 = vpop.f32.mrf.mxu0
  %1760 = vdwg.mxu0
  %vm1761 = vcmask 48128
  %1762 = vst.msk [vmem:[%s11] sm:$0xff] %vm1761, %v1743
  %1763 = vst.msk [vmem:[%s11 + $0x8] sm:$0xff] %vm1761, %v1748
  %1764 = vst.msk [vmem:[%s11 + $0x10] sm:$0xff] %vm1761, %v1753
  %1765 = vst.msk [vmem:[%s11 + $0x18] sm:$0xff] %vm1761, %v1758
  // Predicated region
  $region46: #{cnn_sequential_forward.1} parent=0 // pred_check
    _
  $region47: #{cnn_sequential_forward.1} parent=0 // pred_check_branch
    %1767 = sbr.rel (0) target = $region49
  $region48: #{cnn_sequential_forward.1} parent=0 // pred_region
    _
  $region49: #{cnn_sequential_forward.1} parent=0 // pred_fallthru
    _
  // Predicated region
  $region50: #{cnn_sequential_forward.1} parent=0 // pred_check
    _
  $region51: #{cnn_sequential_forward.1} parent=0 // pred_check_branch
    %1769 = sbr.rel (0) target = $region53
  $region52: #{cnn_sequential_forward.1} parent=0 // pred_region
    _
  $region53: #{cnn_sequential_forward.1} parent=0 // pred_fallthru
    _

</llo_original>
